<compile_context>
chip_gen: v7x
topology: tpu7x:2x2x1
jax: 0.10.0
libtpu: 0.0.40
codegen_flags: <defaults>
</compile_context>

<pallas_src>
import functools

import jax
import jax.numpy as jnp
from jax.experimental import pallas as pl
from jax.experimental.pallas import tpu as pltpu


def _mlp_edge_kernel_t(xT_ref, w1t_ref, b1_ref, w2t_ref, b2_ref, oT_ref):
    # xT_ref:  (IN_DIM, TM)   edges on the lane axis (lane-dense loads)
    # w1t_ref: (HID, IN_DIM)  b1_ref: (HID, 1)  (f32, grid-invariant blocks)
    # w2t_ref: (OUT, HID)     b2_ref: (OUT, 1)  (f32, grid-invariant blocks)
    # oT_ref:  (OUT, TM)      lane-dense output (no masked partial stores)
    #
    # Explicit bf16 MXU operands -> single-pass vmatmul; f32 accumulation.
    x = xT_ref[...].astype(jnp.bfloat16)
    w1 = w1t_ref[...].astype(jnp.bfloat16)
    h = jnp.dot(w1, x, preferred_element_type=jnp.float32) + b1_ref[...]
    h = jnp.maximum(h, 0.0)  # ReLU in f32 on the VPU (works on v5e)
    w2 = w2t_ref[...].astype(jnp.bfloat16)
    y = jnp.dot(w2, h.astype(jnp.bfloat16),
                preferred_element_type=jnp.float32) + b2_ref[...]
    oT_ref[...] = y.astype(oT_ref.dtype)


def _pick_row_tile(n, *, max_tm=65536, min_tm=1024, min_steps=2):
    """Edge-axis (lane) tile.  As large as possible (up to 1 MiB input blocks)
    to amortize the ~0.35us fixed per-grid-step overhead; only shrunk enough
    to keep >= min_steps grid steps so both v7x TensorCores get balanced work.
    Always a multiple of 128 (lane width)."""
    tm = max(128, pl.cdiv(n, 128) * 128)          # whole problem, lane-rounded
    if tm > min_tm:
        per_step = pl.cdiv(pl.cdiv(n, min_steps), 128) * 128
        tm = max(min_tm, per_step)
    return min(tm, max_tm)


@functools.partial(jax.jit, static_argnames=("tm",))
def mlp_edge_encoder_pallas_t(edge_emb_t, w1, b1, w2, b2, *, tm=None):
    """Primary (fast-path) API.

    edge_emb_t: [in_dim, N] (f32 or bf16), edges on the last/lane axis.
    w1: [in_dim, hid]; b1: [hid]; w2: [hid, out_dim]; b2: [out_dim].
    Returns logits^T [out_dim, N] in edge_emb_t's dtype.
    """
    in_dim, n = edge_emb_t.shape
    hid = w1.shape[1]
    out_dim = w2.shape[1]
    if tm is None:
        tm = _pick_row_tile(n)

    # Kernel computes y^T = W^T @ x^T, so pass transposed (tiny) weights.
    w1t = w1.T                                   # (hid, in_dim)
    w2t = w2.T                                   # (out_dim, hid)
    b1c = b1.reshape(hid, 1).astype(jnp.float32)
    b2c = b2.reshape(out_dim, 1).astype(jnp.float32)

    grid = (pl.cdiv(n, tm),)                     # ragged last block handled by Pallas
    return pl.pallas_call(
        _mlp_edge_kernel_t,
        out_shape=jax.ShapeDtypeStruct((out_dim, n), edge_emb_t.dtype),
        grid_spec=pltpu.PrefetchScalarGridSpec(
            num_scalar_prefetch=0,
            grid=grid,
            in_specs=[
                pl.BlockSpec((in_dim, tm), lambda i: (0, i)),
                pl.BlockSpec((hid, in_dim), lambda i: (0, 0)),   # invariant
                pl.BlockSpec((hid, 1), lambda i: (0, 0)),        # invariant
                pl.BlockSpec((out_dim, hid), lambda i: (0, 0)),  # invariant
                pl.BlockSpec((out_dim, 1), lambda i: (0, 0)),    # invariant
            ],
            out_specs=pl.BlockSpec((out_dim, tm), lambda i: (0, i)),
        ),
        compiler_params=pltpu.CompilerParams(
            dimension_semantics=("parallel",)),
    )(edge_emb_t, w1t, b1c, w2t, b2c)


def mlp_edge_encoder_pallas(edge_emb, w1, b1, w2, b2, *, pallas_min_edges=16384):
    """Drop-in PyTorch-layout wrapper: edge_emb [N, in_dim] -> [N, out_dim].

    Below `pallas_min_edges` the fixed pallas_call / per-step overheads
    dominate and XLA's fusion of a 4->mlp_dim->2 MLP is already near-optimal,
    so we use plain jnp.  For large N prefer mlp_edge_encoder_pallas_t with a
    producer that already emits [in_dim, N]; the two transposes here are extra
    HBM passes kept only for layout compatibility."""
    n = edge_emb.shape[0]
    if n < pallas_min_edges:
        h = jnp.maximum(edge_emb @ w1 + b1, 0.0)
        return h @ w2 + b2
    return mlp_edge_encoder_pallas_t(edge_emb.T, w1, b1, w2, b2).T


def init_params(key, in_dim, mlp_dim, out_dim):
    """Deterministic parameter init (PyTorch-Linear-style uniform ranges).
    Weights stored [in, out] (transpose of PyTorch's [out, in])."""
    k1, k2, k3, k4 = jax.random.split(key, 4)
    bound1 = 1.0 / jnp.sqrt(in_dim)
    bound2 = 1.0 / jnp.sqrt(mlp_dim)
    w1 = jax.random.uniform(k1, (in_dim, mlp_dim), jnp.float32, -bound1, bound1)
    b1 = jax.random.uniform(k2, (mlp_dim,), jnp.float32, -bound1, bound1)
    w2 = jax.random.uniform(k3, (mlp_dim, out_dim), jnp.float32, -bound2, bound2)
    b2 = jax.random.uniform(k4, (out_dim,), jnp.float32, -bound2, bound2)
    return w1, b1, w2, b2


if __name__ == "__main__":
    # Module config: weight=False, add_mask=False -> input_dim=4, out_dim=2
    mlp_dim = 32
    in_dim = 2 * 2
    out_dim = 2
    num_edges = 5000  # not tile-aligned -> exercises multi-step grid + ragged last block

    key = jax.random.PRNGKey(0)
    k_x, k_p = jax.random.split(key)
    # Fast-path layout: edges on the last (lane) axis.
    edge_emb_t = jax.random.normal(k_x, (in_dim, num_edges), jnp.float32)
    w1, b1, w2, b2 = init_params(k_p, in_dim, mlp_dim, out_dim)

    out_t = jax.block_until_ready(
        mlp_edge_encoder_pallas_t(edge_emb_t, w1, b1, w2, b2))
    assert out_t.shape == (out_dim, num_edges)
    assert out_t.dtype == jnp.float32

    # Reference 1: matches kernel arithmetic (bf16 MXU operands, f32 accumulate).
    x = edge_emb_t.T
    xb = x.astype(jnp.bfloat16).astype(jnp.float32)
    w1b = w1.astype(jnp.bfloat16).astype(jnp.float32)
    w2b = w2.astype(jnp.bfloat16).astype(jnp.float32)
    h_ref = jnp.maximum(xb @ w1b + b1, 0.0)
    ref_matched = h_ref.astype(jnp.bfloat16).astype(jnp.float32) @ w2b + b2
    err_m = float(jnp.max(jnp.abs(out_t.T - ref_matched)))
    assert jnp.allclose(out_t.T, ref_matched, atol=1e-3, rtol=1e-3), err_m

    # Reference 2: pure-f32 PyTorch semantics (loose tolerance: bf16 operands).
    ref_f32 = jnp.maximum(x @ w1 + b1, 0.0) @ w2 + b2
    err_f = float(jnp.max(jnp.abs(out_t.T - ref_f32)))
    assert jnp.allclose(out_t.T, ref_f32, atol=5e-2, rtol=5e-2), err_f

    # bf16 HBM I/O path (halves bandwidth on this memory-bound kernel).
    out_bf16 = jax.block_until_ready(
        mlp_edge_encoder_pallas_t(edge_emb_t.astype(jnp.bfloat16), w1, b1, w2, b2))
    assert out_bf16.shape == (out_dim, num_edges)
    assert out_bf16.dtype == jnp.bfloat16
    assert jnp.allclose(out_bf16.astype(jnp.float32).T, ref_matched,
                        atol=5e-2, rtol=5e-2)

    # Drop-in [N, in_dim] wrapper (small-N bypass -> plain jnp path).
    out_compat = jax.block_until_ready(
        mlp_edge_encoder_pallas(x, w1, b1, w2, b2))
    assert out_compat.shape == (num_edges, out_dim)
    assert jnp.allclose(out_compat, ref_f32, atol=1e-4, rtol=1e-4)

    print("KERNEL_OK")
</pallas_src>

<mosaic_0001>
module attributes {stable_mosaic.version = 11 : i64} {
  func.func @_mlp_edge_kernel_t(%arg0: i32, %arg1: memref<4x2560xf32, #tpu.memory_space<vmem>>, %arg2: memref<32x4xf32, #tpu.memory_space<vmem>>, %arg3: memref<32x1xf32, #tpu.memory_space<vmem>>, %arg4: memref<2x32xf32, #tpu.memory_space<vmem>>, %arg5: memref<2x1xf32, #tpu.memory_space<vmem>>, %arg6: memref<2x2560xf32, #tpu.memory_space<vmem>>) attributes {dimension_semantics = [#tpu.dimension_semantics<parallel>], iteration_bounds = array<i64: 2>, scalar_prefetch = 0 : i64, scratch_operands = 0 : i64, tpu.core_type = #tpu.core_type<tc>, window_params = [{transform_indices = @transform_0, window_bounds = array<i64: 4, 2560>}, {pipeline_mode = #tpu.pipeline_mode<synchronous>, transform_indices = @transform_1, window_bounds = array<i64: 32, 4>}, {pipeline_mode = #tpu.pipeline_mode<synchronous>, transform_indices = @transform_2, window_bounds = array<i64: 32, 1>}, {pipeline_mode = #tpu.pipeline_mode<synchronous>, transform_indices = @transform_3, window_bounds = array<i64: 2, 32>}, {pipeline_mode = #tpu.pipeline_mode<synchronous>, transform_indices = @transform_4, window_bounds = array<i64: 2, 1>}, {transform_indices = @transform_5, window_bounds = array<i64: 2, 2560>}]} {
    %c0 = arith.constant 0 : index
    %c0_0 = arith.constant 0 : index
    %0 = vector.load %arg1[%c0, %c0_0] : memref<4x2560xf32, #tpu.memory_space<vmem>>, vector<4x2560xf32>
    %1 = arith.truncf %0 : vector<4x2560xf32> to vector<4x2560xbf16>
    %c0_1 = arith.constant 0 : index
    %c0_2 = arith.constant 0 : index
    %2 = vector.load %arg2[%c0_1, %c0_2] : memref<32x4xf32, #tpu.memory_space<vmem>>, vector<32x4xf32>
    %3 = arith.truncf %2 : vector<32x4xf32> to vector<32x4xbf16>
    %cst = arith.constant dense<0.000000e+00> : vector<32x2560xf32>
    %4 = tpu.matmul %3, %1, %cst {dimension_numbers = #tpu.dot_dimension_numbers<[1], [0], [0], [1], [0, 0, 1, 1], [], []>} : vector<32x4xbf16>, vector<4x2560xbf16>, vector<32x2560xf32> -> vector<32x2560xf32>
    %c0_3 = arith.constant 0 : index
    %c0_4 = arith.constant 0 : index
    %5 = vector.load %arg3[%c0_3, %c0_4] : memref<32x1xf32, #tpu.memory_space<vmem>>, vector<32x1xf32>
    %6 = vector.broadcast %5 : vector<32x1xf32> to vector<32x2560xf32>
    %7 = arith.addf %4, %6 : vector<32x2560xf32>
    %cst_5 = arith.constant 0.000000e+00 : f32
    %8 = vector.broadcast %cst_5 : f32 to vector<32x2560xf32>
    %9 = arith.maximumf %7, %8 : vector<32x2560xf32>
    %c0_6 = arith.constant 0 : index
    %c0_7 = arith.constant 0 : index
    %10 = vector.load %arg4[%c0_6, %c0_7] : memref<2x32xf32, #tpu.memory_space<vmem>>, vector<2x32xf32>
    %11 = arith.truncf %10 : vector<2x32xf32> to vector<2x32xbf16>
    %12 = arith.truncf %9 : vector<32x2560xf32> to vector<32x2560xbf16>
    %cst_8 = arith.constant dense<0.000000e+00> : vector<2x2560xf32>
    %13 = tpu.matmul %11, %12, %cst_8 {dimension_numbers = #tpu.dot_dimension_numbers<[1], [0], [0], [1], [0, 0, 1, 1], [], []>} : vector<2x32xbf16>, vector<32x2560xbf16>, vector<2x2560xf32> -> vector<2x2560xf32>
    %c0_9 = arith.constant 0 : index
    %c0_10 = arith.constant 0 : index
    %14 = vector.load %arg5[%c0_9, %c0_10] : memref<2x1xf32, #tpu.memory_space<vmem>>, vector<2x1xf32>
    %15 = vector.broadcast %14 : vector<2x1xf32> to vector<2x2560xf32>
    %16 = arith.addf %13, %15 : vector<2x2560xf32>
    %c0_11 = arith.constant 0 : index
    %c0_12 = arith.constant 0 : index
    %17 = vector.load %arg6[%c0_11, %c0_12] : memref<2x2560xf32, #tpu.memory_space<vmem>>, vector<2x2560xf32>
    tpu.vector_store %arg6[%c0_11, %c0_12], %16 {strides = array<i32>} : memref<2x2560xf32, #tpu.memory_space<vmem>>, vector<2x2560xf32>,
    return
  }
  func.func @transform_0(%arg0: i32) -> (i32, i32) {
    %c0_i32 = arith.constant 0 : i32
    %c0_i32_0 = arith.constant 0 : i32
    return %c0_i32, %arg0 : i32, i32
  }
  func.func @transform_1(%arg0: i32) -> (i32, i32) {
    %c0_i32 = arith.constant 0 : i32
    %c0_i32_0 = arith.constant 0 : i32
    %c0_i32_1 = arith.constant 0 : i32
    return %c0_i32, %c0_i32_0 : i32, i32
  }
  func.func @transform_2(%arg0: i32) -> (i32, i32) {
    %c0_i32 = arith.constant 0 : i32
    %c0_i32_0 = arith.constant 0 : i32
    %c0_i32_1 = arith.constant 0 : i32
    return %c0_i32, %c0_i32_0 : i32, i32
  }
  func.func @transform_3(%arg0: i32) -> (i32, i32) {
    %c0_i32 = arith.constant 0 : i32
    %c0_i32_0 = arith.constant 0 : i32
    %c0_i32_1 = arith.constant 0 : i32
    return %c0_i32, %c0_i32_0 : i32, i32
  }
  func.func @transform_4(%arg0: i32) -> (i32, i32) {
    %c0_i32 = arith.constant 0 : i32
    %c0_i32_0 = arith.constant 0 : i32
    %c0_i32_1 = arith.constant 0 : i32
    return %c0_i32, %c0_i32_0 : i32, i32
  }
  func.func @transform_5(%arg0: i32) -> (i32, i32) {
    %c0_i32 = arith.constant 0 : i32
    %c0_i32_0 = arith.constant 0 : i32
    return %c0_i32, %arg0 : i32, i32
  }
}

</mosaic_0001>

<llo_original>
// kernel: mlp_edge_encoder_pallas_t.1
$region0: #{mlp_edge_encoder_pallas_t.1}
  #allocation0 [shape = 'u32[]', space=smem, size = 0x4, offset = 0x4, fixed_abs, tag = 'smem constant byte address 0x4 - core index']
  #allocation1 [shape = 'u32[144,128]{1,0:T(1,128)}', space=vmem, size = 0x12000, scoped, tag = 'internal scratch']
  %s0 = inlined_call_operand.hbm [shape: f32[4,5000], index: 0, kind: input, shape index: {}]
  %s1 = inlined_call_operand.vmem [shape: f32[32,4], index: 1, kind: input, shape index: {}]
  %s2 = inlined_call_operand.vmem [shape: f32[32,1], index: 2, kind: input, shape index: {}]
  %s3 = inlined_call_operand.vmem [shape: f32[2,32], index: 3, kind: input, shape index: {}]
  %s4 = inlined_call_operand.vmem [shape: f32[2,1], index: 4, kind: input, shape index: {}]
  %s5 = inlined_call_operand.hbm [shape: f32[2,5000], index: 5, kind: output, shape index: {}]
  %s6 = sld [smem:[#allocation0]]
  $region57: #{mlp_edge_encoder_pallas_t.1} parent=0
    _
  %s8 = ssub.s32 1, %s6
  %s9 = scalar_select 0, %s8, %s6
  $region1: #{mlp_edge_encoder_pallas_t.1} parent=0
    #allocation2 [shape = 'u8[81920]{0}', space=vmem, size = 0x14000, scoped, tag = 'input window, operand 0']
    #allocation3 [shape = 's32[2]{0}', space=sflag, size = 0x8, scoped, tag = 'scoped memory for mlp_edge_encoder_pallas_t.1']
    #allocation4 [shape = 's32[2]{0}', space=sflag, size = 0x8, scoped, tag = 'scoped memory for mlp_edge_encoder_pallas_t.1']
    #allocation5 [shape = 'u8[40960]{0}', space=vmem, size = 0xa000, scoped, tag = 'output window, operand 0']
    %10 = vsyncpa [#allocation3], 0
    %s11 = scalar_lea.sflag [#allocation3], 1
    %12 = vsyncpa %s11, 0
    %13 = vsyncpa [#allocation4], 0
    %s14 = scalar_lea.sflag [#allocation4], 1
    %15 = vsyncpa %s14, 0
    loop: start=0, step=1, limit=4
    $region2: #{mlp_edge_encoder_pallas_t.1} parent=1 // loop_pre_header
      _
    $region3: #{mlp_edge_encoder_pallas_t.1} parent=1 // loop_header
      %s17 = sphi 0, %s21
      %p18 = scmp.ge.s32.totalorder %s17, 4
      %s27 = sphi 0, %s29
      %s30 = sphi 0, %s27
      %s31 = sphi 0, %s30
      %s47 = sphi 0, %s31
      %s51 = sphi 0, %s51
      %s53 = sphi 0, %s51
      %s54 = sphi 0, %s53
      %s68 = sphi 0, %s54
      %s72 = sphi 0, %s72
      %s74 = sphi 0, %s72
      %s75 = sphi 0, %s74
      %s89 = sphi 0, %s75
      %s93 = sphi 0, %s93
      %s95 = sphi 0, %s93
      %s96 = sphi 0, %s95
      %s110 = sphi 0, %s96
      %s114 = sphi 0, %s114
      %s116 = sphi 0, %s114
      %s117 = sphi 0, %s116
      %s131 = sphi 0, %s117
      %s137 = sphi 0, %s139
      %s140 = sphi 0, %s137
      %s141 = sphi 0, %s140
      %s157 = sphi 0, %s141
    $region4: #{mlp_edge_encoder_pallas_t.1} parent=1 // loop_header_branch
      %20 = sbr.rel (%p18) target = $region8
    $region5: #{mlp_edge_encoder_pallas_t.1} parent=1 // loop_body
      %s22 = ssub.s32 %s17, 1
      %s23 = ssub.s32 %s17, 2
      %s24 = sadd.s32 %s17, 1
      %s25 = ssub.s32 %s17, %s24
      %p26 = scmp.eq.s32.totalorder %s25, 0
      %s28 = sadd.s32 %s27, 1
      %s29 = scalar_select %p26, %s27, %s28
      %p32 = pneg %p26
      %p33 = scmp.eq.s32.totalorder %s17, 1
      %p34 = por %p32, %p33
      %p35 = scmp.ne.s32.totalorder %s27, %s30
      %p36 = scmp.eq.s32.totalorder %s17, 0
      %p37 = por %p35, %p36
      %p38 = scmp.ne.s32.totalorder %s27, %s30
      %p39 = scmp.eq.s32.totalorder %s22, 1
      %p40 = por %p38, %p39
      %p41 = scmp.ne.s32.totalorder %s30, %s31
      %p42 = scmp.eq.s32.totalorder %s22, 0
      %p43 = por %p41, %p42
      %p44 = scmp.ne.s32.totalorder %s30, %s31
      %p45 = scmp.eq.s32.totalorder %s23, 1
      %p46 = por %p44, %p45
      %p48 = scmp.ne.s32.totalorder %s31, %s47
      %p49 = scmp.eq.s32.totalorder %s23, 0
      %p50 = por %p48, %p49
      %s52 = sadd.s32 %s51, 1
      %p55 = scmp.eq.s32.totalorder %s17, 1
      %p56 = scmp.ne.s32.totalorder %s51, %s53
      %p57 = scmp.eq.s32.totalorder %s17, 0
      %p58 = por %p56, %p57
      %p59 = scmp.ne.s32.totalorder %s51, %s53
      %p60 = scmp.eq.s32.totalorder %s22, 1
      %p61 = por %p59, %p60
      %p62 = scmp.ne.s32.totalorder %s53, %s54
      %p63 = scmp.eq.s32.totalorder %s22, 0
      %p64 = por %p62, %p63
      %p65 = scmp.ne.s32.totalorder %s53, %s54
      %p66 = scmp.eq.s32.totalorder %s23, 1
      %p67 = por %p65, %p66
      %p69 = scmp.ne.s32.totalorder %s54, %s68
      %p70 = scmp.eq.s32.totalorder %s23, 0
      %p71 = por %p69, %p70
      %s73 = sadd.s32 %s72, 1
      %p76 = scmp.eq.s32.totalorder %s17, 1
      %p77 = scmp.ne.s32.totalorder %s72, %s74
      %p78 = scmp.eq.s32.totalorder %s17, 0
      %p79 = por %p77, %p78
      %p80 = scmp.ne.s32.totalorder %s72, %s74
      %p81 = scmp.eq.s32.totalorder %s22, 1
      %p82 = por %p80, %p81
      %p83 = scmp.ne.s32.totalorder %s74, %s75
      %p84 = scmp.eq.s32.totalorder %s22, 0
      %p85 = por %p83, %p84
      %p86 = scmp.ne.s32.totalorder %s74, %s75
      %p87 = scmp.eq.s32.totalorder %s23, 1
      %p88 = por %p86, %p87
      %p90 = scmp.ne.s32.totalorder %s75, %s89
      %p91 = scmp.eq.s32.totalorder %s23, 0
      %p92 = por %p90, %p91
      %s94 = sadd.s32 %s93, 1
      %p97 = scmp.eq.s32.totalorder %s17, 1
      %p98 = scmp.ne.s32.totalorder %s93, %s95
      %p99 = scmp.eq.s32.totalorder %s17, 0
      %p100 = por %p98, %p99
      %p101 = scmp.ne.s32.totalorder %s93, %s95
      %p102 = scmp.eq.s32.totalorder %s22, 1
      %p103 = por %p101, %p102
      %p104 = scmp.ne.s32.totalorder %s95, %s96
      %p105 = scmp.eq.s32.totalorder %s22, 0
      %p106 = por %p104, %p105
      %p107 = scmp.ne.s32.totalorder %s95, %s96
      %p108 = scmp.eq.s32.totalorder %s23, 1
      %p109 = por %p107, %p108
      %p111 = scmp.ne.s32.totalorder %s96, %s110
      %p112 = scmp.eq.s32.totalorder %s23, 0
      %p113 = por %p111, %p112
      %s115 = sadd.s32 %s114, 1
      %p118 = scmp.eq.s32.totalorder %s17, 1
      %p119 = scmp.ne.s32.totalorder %s114, %s116
      %p120 = scmp.eq.s32.totalorder %s17, 0
      %p121 = por %p119, %p120
      %p122 = scmp.ne.s32.totalorder %s114, %s116
      %p123 = scmp.eq.s32.totalorder %s22, 1
      %p124 = por %p122, %p123
      %p125 = scmp.ne.s32.totalorder %s116, %s117
      %p126 = scmp.eq.s32.totalorder %s22, 0
      %p127 = por %p125, %p126
      %p128 = scmp.ne.s32.totalorder %s116, %s117
      %p129 = scmp.eq.s32.totalorder %s23, 1
      %p130 = por %p128, %p129
      %p132 = scmp.ne.s32.totalorder %s117, %s131
      %p133 = scmp.eq.s32.totalorder %s23, 0
      %p134 = por %p132, %p133
      %s135 = ssub.s32 %s17, %s24
      %p136 = scmp.eq.s32.totalorder %s135, 0
      %s138 = sadd.s32 %s137, 1
      %s139 = scalar_select %p136, %s137, %s138
      %p142 = pneg %p136
      %p143 = scmp.eq.s32.totalorder %s17, 1
      %p144 = por %p142, %p143
      %p145 = scmp.ne.s32.totalorder %s137, %s140
      %p146 = scmp.eq.s32.totalorder %s17, 0
      %p147 = por %p145, %p146
      %p148 = scmp.ne.s32.totalorder %s137, %s140
      %p149 = scmp.eq.s32.totalorder %s22, 1
      %p150 = por %p148, %p149
      %p151 = scmp.ne.s32.totalorder %s140, %s141
      %p152 = scmp.eq.s32.totalorder %s22, 0
      %p153 = por %p151, %p152
      %p154 = scmp.ne.s32.totalorder %s140, %s141
      %p155 = scmp.eq.s32.totalorder %s23, 1
      %p156 = por %p154, %p155
      %p158 = scmp.ne.s32.totalorder %s141, %s157
      %p159 = scmp.eq.s32.totalorder %s23, 0
      %p160 = por %p158, %p159
      %p161 = scmp.le.s32.totalorder 1, %s17
      %p162 = scmp.lt.s32.totalorder %s17, 3
      %p163 = pnand %p161, %p162
      %p164 = pneg %p163
      // Predicated region
      $region9: #{mlp_edge_encoder_pallas_t.1} parent=5 // pred_check
        _
      $region10: #{mlp_edge_encoder_pallas_t.1} parent=5 // pred_check_branch
        %166 = sbr.rel (%p163) target = $region12
      $region11: #{mlp_edge_encoder_pallas_t.1} parent=5 // pred_region
        %s167 = ssub.s32 %s17, 1
        // Predicated region
        $region13: #{mlp_edge_encoder_pallas_t.1} parent=11 // pred_check
          %p168 = pneg %p64
        $region14: #{mlp_edge_encoder_pallas_t.1} parent=11 // pred_check_branch
          %170 = sbr.rel (%p168) target = $region16
        $region15: #{mlp_edge_encoder_pallas_t.1} parent=11 // pred_region
          _
        $region16: #{mlp_edge_encoder_pallas_t.1} parent=11 // pred_fallthru
          _
        // Predicated region
        $region17: #{mlp_edge_encoder_pallas_t.1} parent=11 // pred_check
          %p171 = pneg %p85
        $region18: #{mlp_edge_encoder_pallas_t.1} parent=11 // pred_check_branch
          %173 = sbr.rel (%p171) target = $region20
        $region19: #{mlp_edge_encoder_pallas_t.1} parent=11 // pred_region
          _
        $region20: #{mlp_edge_encoder_pallas_t.1} parent=11 // pred_fallthru
          _
        // Predicated region
        $region21: #{mlp_edge_encoder_pallas_t.1} parent=11 // pred_check
          %p174 = pneg %p106
        $region22: #{mlp_edge_encoder_pallas_t.1} parent=11 // pred_check_branch
          %176 = sbr.rel (%p174) target = $region24
        $region23: #{mlp_edge_encoder_pallas_t.1} parent=11 // pred_region
          _
        $region24: #{mlp_edge_encoder_pallas_t.1} parent=11 // pred_fallthru
          _
        // Predicated region
        $region25: #{mlp_edge_encoder_pallas_t.1} parent=11 // pred_check
          %p177 = pneg %p127
        $region26: #{mlp_edge_encoder_pallas_t.1} parent=11 // pred_check_branch
          %179 = sbr.rel (%p177) target = $region28
        $region27: #{mlp_edge_encoder_pallas_t.1} parent=11 // pred_region
          _
        $region28: #{mlp_edge_encoder_pallas_t.1} parent=11 // pred_fallthru
          _
      $region12: #{mlp_edge_encoder_pallas_t.1} parent=5 // pred_fallthru
        _
      %p180 = scmp.lt.s32.totalorder %s17, 2
      // Predicated region
      $region29: #{mlp_edge_encoder_pallas_t.1} parent=5 // pred_check
        %p181 = pneg %p180
      $region30: #{mlp_edge_encoder_pallas_t.1} parent=5 // pred_check_branch
        %183 = sbr.rel (%p181) target = $region32
      $region31: #{mlp_edge_encoder_pallas_t.1} parent=5 // pred_region
        // Predicated region
        $region33: #{mlp_edge_encoder_pallas_t.1} parent=31 // pred_check
          %p184 = pneg %p37
        $region34: #{mlp_edge_encoder_pallas_t.1} parent=31 // pred_check_branch
          %186 = sbr.rel (%p184) target = $region36
        $region35: #{mlp_edge_encoder_pallas_t.1} parent=31 // pred_region
          %s187 = sand.u32 %s27, 1
          %s188 = scalar_lea.sflag [#allocation3], %s187
          %s189 = sand.u32 %s27, 1
          %s190 = smul.addr %s189, 80
          %s191 = scalar_lea.vmem [#allocation2], %s190
          %s192 = smul.u32 20, %s17
          %s194 = ssub.s32 1280, 1280
          %195 = vsyncadd %s188, %s194
          %s196 = smul.addr %s192, 64
          %s197 = scalar_lea.hbm %s0, %s196
          %s199 = sshll.u32 %s191, 4
          %s200 = int_to_ptr.vmem [resolvable:$true] %s199
          %202 = dma.hbm_to_vmem [thread:$0]  %s197, 1280, %s200, %s188
        $region36: #{mlp_edge_encoder_pallas_t.1} parent=31 // pred_fallthru
          _
      $region32: #{mlp_edge_encoder_pallas_t.1} parent=5 // pred_fallthru
        _
      %p203 = scmp.le.s32.totalorder 1, %s17
      %p204 = scmp.lt.s32.totalorder %s17, 3
      %p205 = pnand %p203, %p204
      %p206 = pneg %p205
      // Predicated region
      $region37: #{mlp_edge_encoder_pallas_t.1} parent=5 // pred_check
        _
      $region38: #{mlp_edge_encoder_pallas_t.1} parent=5 // pred_check_branch
        %208 = sbr.rel (%p205) target = $region40
      $region39: #{mlp_edge_encoder_pallas_t.1} parent=5 // pred_region
        %s209 = ssub.s32 %s17, 1
        %s210 = sand.u32 %s30, 1
        %s211 = scalar_lea.sflag [#allocation3], %s210
        %s212 = sand.u32 %s30, 1
        %s213 = smul.addr %s212, 80
        %s214 = scalar_lea.vmem [#allocation2], %s213
        // Predicated region
        $region41: #{mlp_edge_encoder_pallas_t.1} parent=39 // pred_check
          %p215 = pneg %p43
        $region42: #{mlp_edge_encoder_pallas_t.1} parent=39 // pred_check_branch
          %217 = sbr.rel (%p215) target = $region44
        $region43: #{mlp_edge_encoder_pallas_t.1} parent=39 // pred_region
          %218 = dma.done %s211, 1280
        $region44: #{mlp_edge_encoder_pallas_t.1} parent=39 // pred_fallthru
          _
        %s219 = sand.u32 %s30, 1
        %s220 = scalar_lea.sflag [#allocation3], %s219
        %s221 = sand.u32 %s30, 1
        %s222 = smul.addr %s221, 80
        %s223 = scalar_lea.vmem [#allocation2], %s222
        %p224 = pneg %p43
        %p225 = pneg %p40
        %p226 = pneg %p64
        %p227 = pneg %p61
        %p228 = pneg %p85
        %p229 = pneg %p82
        %p230 = pneg %p106
        %p231 = pneg %p103
        %p232 = pneg %p127
        %p233 = pneg %p124
        %p234 = pneg %p153
        %p235 = pneg %p150
        %s236 = sand.u32 %s140, 1
        %s237 = scalar_lea.sflag [#allocation4], %s236
        %s238 = sand.u32 %s140, 1
        %s239 = smul.addr %s238, 40
        %s240 = scalar_lea.vmem [#allocation5], %s239
        %s241 = smul.u32 20, %s22
        %s242 = smul.u32 20, %s22
        %v244 = vld [vmem:[%s214] sm:$0xff]
        %v245 = vld [vmem:[%s214 + $0x8] sm:$0xff]
        %v246 = vld [vmem:[%s214 + $0x10] sm:$0xff]
        %v247 = vld [vmem:[%s214 + $0x18] sm:$0xff]
        %v248 = vld [vmem:[%s214 + $0x20] sm:$0xff]
        %v249 = vld [vmem:[%s214 + $0x28] sm:$0xff]
        %v250 = vld [vmem:[%s214 + $0x30] sm:$0xff]
        %v251 = vld [vmem:[%s214 + $0x38] sm:$0xff]
        %v252 = vld [vmem:[%s214 + $0x40] sm:$0xff]
        %v253 = vld [vmem:[%s214 + $0x48] sm:$0xff]
        %v264 = vcombine.high %v244, %v244
        %v265 = vcombine.high %v245, %v245
        %v266 = vcombine.high %v246, %v246
        %v267 = vcombine.high %v247, %v247
        %v268 = vcombine.high %v248, %v248
        %v269 = vcombine.high %v249, %v249
        %v270 = vcombine.high %v250, %v250
        %v271 = vcombine.high %v251, %v251
        %v272 = vcombine.high %v252, %v252
        %v273 = vcombine.high %v253, %v253
        %v284 = vpack.c.bf16 %v244, %v244
        %v285 = vpack.c.bf16 %v264, %v264
        %v286 = vpack.c.bf16 %v245, %v245
        %v287 = vpack.c.bf16 %v265, %v265
        %v288 = vpack.c.bf16 %v246, %v246
        %v289 = vpack.c.bf16 %v266, %v266
        %v290 = vpack.c.bf16 %v247, %v247
        %v291 = vpack.c.bf16 %v267, %v267
        %v292 = vpack.c.bf16 %v248, %v248
        %v293 = vpack.c.bf16 %v268, %v268
        %v294 = vpack.c.bf16 %v249, %v249
        %v295 = vpack.c.bf16 %v269, %v269
        %v296 = vpack.c.bf16 %v250, %v250
        %v297 = vpack.c.bf16 %v270, %v270
        %v298 = vpack.c.bf16 %v251, %v251
        %v299 = vpack.c.bf16 %v271, %v271
        %v300 = vpack.c.bf16 %v252, %v252
        %v301 = vpack.c.bf16 %v272, %v272
        %v302 = vpack.c.bf16 %v253, %v253
        %v303 = vpack.c.bf16 %v273, %v273
        %v304 = vld [vmem:[%s1] sm:$0xff]
        %v305 = vld [vmem:[%s1 + $0x8] sm:$0xff]
        %v306 = vld [vmem:[%s1 + $0x10] sm:$0xff]
        %v307 = vld [vmem:[%s1 + $0x18] sm:$0xff]
        %v308 = vpack.c.bf16 %v305, %v304
        %v309 = vpack.c.bf16 %v307, %v306
        %v310 = vld [vmem:[%s2] sm:$0xff]
        %v311 = vld [vmem:[%s2 + $0x8] sm:$0xff]
        %v312 = vld [vmem:[%s2 + $0x10] sm:$0xff]
        %v313 = vld [vmem:[%s2 + $0x18] sm:$0xff]
        %315 = vset.pattern.permute.xlu0 0
        %316 = vperm.xlu0 %315, %v310
        %v317 = vpop.permute.xlu0 %316
        %320 = vset.pattern.permute.xlu0 0
        %321 = vperm.xlu0 %320, %v311
        %v322 = vpop.permute.xlu0 %321
        %325 = vset.pattern.permute.xlu0 0
        %326 = vperm.xlu0 %325, %v312
        %v327 = vpop.permute.xlu0 %326
        %330 = vset.pattern.permute.xlu0 0
        %331 = vperm.xlu0 %330, %v313
        %v332 = vpop.permute.xlu0 %331
        %vm334 = vcmask 31744
        %v336 = vsel %vm334, %v308, 0
        %v339 = vsel %vm334, %v309, 0
        %vm341 = vcmask 1041408
        %v343 = vsel %vm341, %v284, 0
        %v346 = vsel %vm341, %v285, 0
        %v349 = vsel %vm341, %v286, 0
        %v352 = vsel %vm341, %v287, 0
        %v355 = vsel %vm341, %v288, 0
        %v358 = vsel %vm341, %v289, 0
        %v361 = vsel %vm341, %v290, 0
        %v364 = vsel %vm341, %v291, 0
        %v367 = vsel %vm341, %v292, 0
        %v370 = vsel %vm341, %v293, 0
        %v373 = vsel %vm341, %v294, 0
        %v376 = vsel %vm341, %v295, 0
        %v379 = vsel %vm341, %v296, 0
        %v382 = vsel %vm341, %v297, 0
        %v385 = vsel %vm341, %v298, 0
        %v388 = vsel %vm341, %v299, 0
        %v391 = vsel %vm341, %v300, 0
        %v394 = vsel %vm341, %v301, 0
        %v397 = vsel %vm341, %v302, 0
        %v400 = vsel %vm341, %v303, 0
        %402 = vmatprep.subr.bf16.mxu0 %v346
        %403 = vmatpush1.bf16.msra.mxu0 %v343
        %404 = vmatprep.subr.bf16.mxu0 0
        %405 = vmatpush1.bf16.msra.mxu0 0
        %406 = vmatprep.subr.bf16.mxu0 0
        %407 = vmatpush1.bf16.msra.mxu0 0
        %408 = vmatprep.subr.bf16.mxu0 0
        %409 = vmatpush1.bf16.msra.mxu0 0
        %410 = vmatprep.subr.bf16.mxu0 0
        %411 = vmatpush1.bf16.msra.mxu0 0
        %412 = vmatprep.subr.bf16.mxu0 0
        %413 = vmatpush1.bf16.msra.mxu0 0
        %414 = vmatprep.subr.bf16.mxu0 0
        %415 = vmatpush1.bf16.msra.mxu0 0
        %416 = vmatprep.subr.bf16.mxu0 0
        %417 = vmatpush1.bf16.msra.mxu0 0
        %418 = vmatprep.subr.bf16.mxu0 0
        %419 = vmatpush1.bf16.msra.mxu0 0
        %420 = vmatprep.subr.bf16.mxu0 0
        %421 = vmatpush1.bf16.msra.mxu0 0
        %422 = vmatprep.subr.bf16.mxu0 0
        %423 = vmatpush1.bf16.msra.mxu0 0
        %424 = vmatprep.subr.bf16.mxu0 0
        %425 = vmatpush1.bf16.msra.mxu0 0
        %426 = vmatprep.subr.bf16.mxu0 0
        %427 = vmatpush1.bf16.msra.mxu0 0
        %428 = vmatprep.subr.bf16.mxu0 0
        %429 = vmatpush1.bf16.msra.mxu0 0
        %430 = vmatprep.subr.bf16.mxu0 0
        %431 = vmatpush1.bf16.msra.mxu0 0
        %432 = vmatprep.subr.bf16.mxu0 0
        %433 = vmatpush1.bf16.msra.mxu0 0
        %434 = vmatprep.mubr.bf16.mxu0 0
        %435 = vmatmul.mubr.bf16.gmra.mrb[0].mxu0 %v336
        %v436 = vpop.f32.mrb[0].mxu0
        %v437 = vadd.f32 %v317, %v436
        %v438 = vpop.f32.mrb[0].mxu0
        %v439 = vadd.f32 %v317, %v438
        %v440 = vpop.f32.mrb[0].mxu0
        %v441 = vadd.f32 %v322, %v440
        %v442 = vpop.f32.mrb[0].mxu0
        %v443 = vadd.f32 %v322, %v442
        %444 = vmatprep.mubr.bf16.mxu0 0
        %445 = vmatmul.mubr.bf16.gmra.mrb[0].mxu0 %v339
        %v446 = vpop.f32.mrb[0].mxu0
        %v447 = vadd.f32 %v327, %v446
        %v448 = vpop.f32.mrb[0].mxu0
        %v449 = vadd.f32 %v327, %v448
        %v450 = vpop.f32.mrb[0].mxu0
        %v451 = vadd.f32 %v332, %v450
        %v452 = vpop.f32.mrb[0].mxu0
        %v453 = vadd.f32 %v332, %v452
        %454 = vdwg.mxu0
        %455 = vmatprep.subr.bf16.mxu0 %v352
        %456 = vmatpush1.bf16.msra.mxu0 %v349
        %457 = vmatprep.subr.bf16.mxu0 0
        %458 = vmatpush1.bf16.msra.mxu0 0
        %459 = vmatprep.subr.bf16.mxu0 0
        %460 = vmatpush1.bf16.msra.mxu0 0
        %461 = vmatprep.subr.bf16.mxu0 0
        %462 = vmatpush1.bf16.msra.mxu0 0
        %463 = vmatprep.subr.bf16.mxu0 0
        %464 = vmatpush1.bf16.msra.mxu0 0
        %465 = vmatprep.subr.bf16.mxu0 0
        %466 = vmatpush1.bf16.msra.mxu0 0
        %467 = vmatprep.subr.bf16.mxu0 0
        %468 = vmatpush1.bf16.msra.mxu0 0
        %469 = vmatprep.subr.bf16.mxu0 0
        %470 = vmatpush1.bf16.msra.mxu0 0
        %471 = vmatprep.subr.bf16.mxu0 0
        %472 = vmatpush1.bf16.msra.mxu0 0
        %473 = vmatprep.subr.bf16.mxu0 0
        %474 = vmatpush1.bf16.msra.mxu0 0
        %475 = vmatprep.subr.bf16.mxu0 0
        %476 = vmatpush1.bf16.msra.mxu0 0
        %477 = vmatprep.subr.bf16.mxu0 0
        %478 = vmatpush1.bf16.msra.mxu0 0
        %479 = vmatprep.subr.bf16.mxu0 0
        %480 = vmatpush1.bf16.msra.mxu0 0
        %481 = vmatprep.subr.bf16.mxu0 0
        %482 = vmatpush1.bf16.msra.mxu0 0
        %483 = vmatprep.subr.bf16.mxu0 0
        %484 = vmatpush1.bf16.msra.mxu0 0
        %485 = vmatprep.subr.bf16.mxu0 0
        %486 = vmatpush1.bf16.msra.mxu0 0
        %487 = vmatprep.mubr.bf16.mxu0 0
        %488 = vmatmul.mubr.bf16.gmra.mrb[0].mxu0 %v336
        %v489 = vpop.f32.mrb[0].mxu0
        %v490 = vadd.f32 %v317, %v489
        %v491 = vpop.f32.mrb[0].mxu0
        %v492 = vadd.f32 %v317, %v491
        %v493 = vpop.f32.mrb[0].mxu0
        %v494 = vadd.f32 %v322, %v493
        %v495 = vpop.f32.mrb[0].mxu0
        %v496 = vadd.f32 %v322, %v495
        %497 = vmatprep.mubr.bf16.mxu0 0
        %498 = vmatmul.mubr.bf16.gmra.mrb[0].mxu0 %v339
        %v499 = vpop.f32.mrb[0].mxu0
        %v500 = vadd.f32 %v327, %v499
        %v501 = vpop.f32.mrb[0].mxu0
        %v502 = vadd.f32 %v327, %v501
        %v503 = vpop.f32.mrb[0].mxu0
        %v504 = vadd.f32 %v332, %v503
        %v505 = vpop.f32.mrb[0].mxu0
        %v506 = vadd.f32 %v332, %v505
        %507 = vdwg.mxu0
        %508 = vmatprep.subr.bf16.mxu0 %v358
        %509 = vmatpush1.bf16.msra.mxu0 %v355
        %510 = vmatprep.subr.bf16.mxu0 0
        %511 = vmatpush1.bf16.msra.mxu0 0
        %512 = vmatprep.subr.bf16.mxu0 0
        %513 = vmatpush1.bf16.msra.mxu0 0
        %514 = vmatprep.subr.bf16.mxu0 0
        %515 = vmatpush1.bf16.msra.mxu0 0
        %516 = vmatprep.subr.bf16.mxu0 0
        %517 = vmatpush1.bf16.msra.mxu0 0
        %518 = vmatprep.subr.bf16.mxu0 0
        %519 = vmatpush1.bf16.msra.mxu0 0
        %520 = vmatprep.subr.bf16.mxu0 0
        %521 = vmatpush1.bf16.msra.mxu0 0
        %522 = vmatprep.subr.bf16.mxu0 0
        %523 = vmatpush1.bf16.msra.mxu0 0
        %524 = vmatprep.subr.bf16.mxu0 0
        %525 = vmatpush1.bf16.msra.mxu0 0
        %526 = vmatprep.subr.bf16.mxu0 0
        %527 = vmatpush1.bf16.msra.mxu0 0
        %528 = vmatprep.subr.bf16.mxu0 0
        %529 = vmatpush1.bf16.msra.mxu0 0
        %530 = vmatprep.subr.bf16.mxu0 0
        %531 = vmatpush1.bf16.msra.mxu0 0
        %532 = vmatprep.subr.bf16.mxu0 0
        %533 = vmatpush1.bf16.msra.mxu0 0
        %534 = vmatprep.subr.bf16.mxu0 0
        %535 = vmatpush1.bf16.msra.mxu0 0
        %536 = vmatprep.subr.bf16.mxu0 0
        %537 = vmatpush1.bf16.msra.mxu0 0
        %538 = vmatprep.subr.bf16.mxu0 0
        %539 = vmatpush1.bf16.msra.mxu0 0
        %540 = vmatprep.mubr.bf16.mxu0 0
        %541 = vmatmul.mubr.bf16.gmra.mrb[0].mxu0 %v336
        %v542 = vpop.f32.mrb[0].mxu0
        %v543 = vadd.f32 %v317, %v542
        %v544 = vpop.f32.mrb[0].mxu0
        %v545 = vadd.f32 %v317, %v544
        %v546 = vpop.f32.mrb[0].mxu0
        %v547 = vadd.f32 %v322, %v546
        %v548 = vpop.f32.mrb[0].mxu0
        %v549 = vadd.f32 %v322, %v548
        %550 = vmatprep.mubr.bf16.mxu0 0
        %551 = vmatmul.mubr.bf16.gmra.mrb[0].mxu0 %v339
        %v552 = vpop.f32.mrb[0].mxu0
        %v553 = vadd.f32 %v327, %v552
        %v554 = vpop.f32.mrb[0].mxu0
        %v555 = vadd.f32 %v327, %v554
        %v556 = vpop.f32.mrb[0].mxu0
        %v557 = vadd.f32 %v332, %v556
        %v558 = vpop.f32.mrb[0].mxu0
        %v559 = vadd.f32 %v332, %v558
        %560 = vdwg.mxu0
        %561 = vmatprep.subr.bf16.mxu0 %v364
        %562 = vmatpush1.bf16.msra.mxu0 %v361
        %563 = vmatprep.subr.bf16.mxu0 0
        %564 = vmatpush1.bf16.msra.mxu0 0
        %565 = vmatprep.subr.bf16.mxu0 0
        %566 = vmatpush1.bf16.msra.mxu0 0
        %567 = vmatprep.subr.bf16.mxu0 0
        %568 = vmatpush1.bf16.msra.mxu0 0
        %569 = vmatprep.subr.bf16.mxu0 0
        %570 = vmatpush1.bf16.msra.mxu0 0
        %571 = vmatprep.subr.bf16.mxu0 0
        %572 = vmatpush1.bf16.msra.mxu0 0
        %573 = vmatprep.subr.bf16.mxu0 0
        %574 = vmatpush1.bf16.msra.mxu0 0
        %575 = vmatprep.subr.bf16.mxu0 0
        %576 = vmatpush1.bf16.msra.mxu0 0
        %577 = vmatprep.subr.bf16.mxu0 0
        %578 = vmatpush1.bf16.msra.mxu0 0
        %579 = vmatprep.subr.bf16.mxu0 0
        %580 = vmatpush1.bf16.msra.mxu0 0
        %581 = vmatprep.subr.bf16.mxu0 0
        %582 = vmatpush1.bf16.msra.mxu0 0
        %583 = vmatprep.subr.bf16.mxu0 0
        %584 = vmatpush1.bf16.msra.mxu0 0
        %585 = vmatprep.subr.bf16.mxu0 0
        %586 = vmatpush1.bf16.msra.mxu0 0
        %587 = vmatprep.subr.bf16.mxu0 0
        %588 = vmatpush1.bf16.msra.mxu0 0
        %589 = vmatprep.subr.bf16.mxu0 0
        %590 = vmatpush1.bf16.msra.mxu0 0
        %591 = vmatprep.subr.bf16.mxu0 0
        %592 = vmatpush1.bf16.msra.mxu0 0
        %593 = vmatprep.mubr.bf16.mxu0 0
        %594 = vmatmul.mubr.bf16.gmra.mrb[0].mxu0 %v336
        %v595 = vpop.f32.mrb[0].mxu0
        %v596 = vadd.f32 %v317, %v595
        %v597 = vpop.f32.mrb[0].mxu0
        %v598 = vadd.f32 %v317, %v597
        %v599 = vpop.f32.mrb[0].mxu0
        %v600 = vadd.f32 %v322, %v599
        %v601 = vpop.f32.mrb[0].mxu0
        %v602 = vadd.f32 %v322, %v601
        %603 = vmatprep.mubr.bf16.mxu0 0
        %604 = vmatmul.mubr.bf16.gmra.mrb[0].mxu0 %v339
        %v605 = vpop.f32.mrb[0].mxu0
        %v606 = vadd.f32 %v327, %v605
        %v607 = vpop.f32.mrb[0].mxu0
        %v608 = vadd.f32 %v327, %v607
        %v609 = vpop.f32.mrb[0].mxu0
        %v610 = vadd.f32 %v332, %v609
        %v611 = vpop.f32.mrb[0].mxu0
        %v612 = vadd.f32 %v332, %v611
        %613 = vdwg.mxu0
        %614 = vmatprep.subr.bf16.mxu0 %v370
        %615 = vmatpush1.bf16.msra.mxu0 %v367
        %616 = vmatprep.subr.bf16.mxu0 0
        %617 = vmatpush1.bf16.msra.mxu0 0
        %618 = vmatprep.subr.bf16.mxu0 0
        %619 = vmatpush1.bf16.msra.mxu0 0
        %620 = vmatprep.subr.bf16.mxu0 0
        %621 = vmatpush1.bf16.msra.mxu0 0
        %622 = vmatprep.subr.bf16.mxu0 0
        %623 = vmatpush1.bf16.msra.mxu0 0
        %624 = vmatprep.subr.bf16.mxu0 0
        %625 = vmatpush1.bf16.msra.mxu0 0
        %626 = vmatprep.subr.bf16.mxu0 0
        %627 = vmatpush1.bf16.msra.mxu0 0
        %628 = vmatprep.subr.bf16.mxu0 0
        %629 = vmatpush1.bf16.msra.mxu0 0
        %630 = vmatprep.subr.bf16.mxu0 0
        %631 = vmatpush1.bf16.msra.mxu0 0
        %632 = vmatprep.subr.bf16.mxu0 0
        %633 = vmatpush1.bf16.msra.mxu0 0
        %634 = vmatprep.subr.bf16.mxu0 0
        %635 = vmatpush1.bf16.msra.mxu0 0
        %636 = vmatprep.subr.bf16.mxu0 0
        %637 = vmatpush1.bf16.msra.mxu0 0
        %638 = vmatprep.subr.bf16.mxu0 0
        %639 = vmatpush1.bf16.msra.mxu0 0
        %640 = vmatprep.subr.bf16.mxu0 0
        %641 = vmatpush1.bf16.msra.mxu0 0
        %642 = vmatprep.subr.bf16.mxu0 0
        %643 = vmatpush1.bf16.msra.mxu0 0
        %644 = vmatprep.subr.bf16.mxu0 0
        %645 = vmatpush1.bf16.msra.mxu0 0
        %646 = vmatprep.mubr.bf16.mxu0 0
        %647 = vmatmul.mubr.bf16.gmra.mrb[0].mxu0 %v336
        %v648 = vpop.f32.mrb[0].mxu0
        %v649 = vadd.f32 %v317, %v648
        %v650 = vpop.f32.mrb[0].mxu0
        %v651 = vadd.f32 %v317, %v650
        %v652 = vpop.f32.mrb[0].mxu0
        %v653 = vadd.f32 %v322, %v652
        %v654 = vpop.f32.mrb[0].mxu0
        %v655 = vadd.f32 %v322, %v654
        %656 = vmatprep.mubr.bf16.mxu0 0
        %657 = vmatmul.mubr.bf16.gmra.mrb[0].mxu0 %v339
        %v658 = vpop.f32.mrb[0].mxu0
        %v659 = vadd.f32 %v327, %v658
        %v660 = vpop.f32.mrb[0].mxu0
        %v661 = vadd.f32 %v327, %v660
        %v662 = vpop.f32.mrb[0].mxu0
        %v663 = vadd.f32 %v332, %v662
        %v664 = vpop.f32.mrb[0].mxu0
        %v665 = vadd.f32 %v332, %v664
        %666 = vdwg.mxu0
        %667 = vmatprep.subr.bf16.mxu0 %v376
        %668 = vmatpush1.bf16.msra.mxu0 %v373
        %669 = vmatprep.subr.bf16.mxu0 0
        %670 = vmatpush1.bf16.msra.mxu0 0
        %671 = vmatprep.subr.bf16.mxu0 0
        %672 = vmatpush1.bf16.msra.mxu0 0
        %673 = vmatprep.subr.bf16.mxu0 0
        %674 = vmatpush1.bf16.msra.mxu0 0
        %675 = vmatprep.subr.bf16.mxu0 0
        %676 = vmatpush1.bf16.msra.mxu0 0
        %677 = vmatprep.subr.bf16.mxu0 0
        %678 = vmatpush1.bf16.msra.mxu0 0
        %679 = vmatprep.subr.bf16.mxu0 0
        %680 = vmatpush1.bf16.msra.mxu0 0
        %681 = vmatprep.subr.bf16.mxu0 0
        %682 = vmatpush1.bf16.msra.mxu0 0
        %683 = vmatprep.subr.bf16.mxu0 0
        %684 = vmatpush1.bf16.msra.mxu0 0
        %685 = vmatprep.subr.bf16.mxu0 0
        %686 = vmatpush1.bf16.msra.mxu0 0
        %687 = vmatprep.subr.bf16.mxu0 0
        %688 = vmatpush1.bf16.msra.mxu0 0
        %689 = vmatprep.subr.bf16.mxu0 0
        %690 = vmatpush1.bf16.msra.mxu0 0
        %691 = vmatprep.subr.bf16.mxu0 0
        %692 = vmatpush1.bf16.msra.mxu0 0
        %693 = vmatprep.subr.bf16.mxu0 0
        %694 = vmatpush1.bf16.msra.mxu0 0
        %695 = vmatprep.subr.bf16.mxu0 0
        %696 = vmatpush1.bf16.msra.mxu0 0
        %697 = vmatprep.subr.bf16.mxu0 0
        %698 = vmatpush1.bf16.msra.mxu0 0
        %699 = vmatprep.mubr.bf16.mxu0 0
        %700 = vmatmul.mubr.bf16.gmra.mrb[0].mxu0 %v336
        %v701 = vpop.f32.mrb[0].mxu0
        %v702 = vadd.f32 %v317, %v701
        %v703 = vpop.f32.mrb[0].mxu0
        %v704 = vadd.f32 %v317, %v703
        %v705 = vpop.f32.mrb[0].mxu0
        %v706 = vadd.f32 %v322, %v705
        %v707 = vpop.f32.mrb[0].mxu0
        %v708 = vadd.f32 %v322, %v707
        %709 = vmatprep.mubr.bf16.mxu0 0
        %710 = vmatmul.mubr.bf16.gmra.mrb[0].mxu0 %v339
        %v711 = vpop.f32.mrb[0].mxu0
        %v712 = vadd.f32 %v327, %v711
        %v713 = vpop.f32.mrb[0].mxu0
        %v714 = vadd.f32 %v327, %v713
        %v715 = vpop.f32.mrb[0].mxu0
        %v716 = vadd.f32 %v332, %v715
        %v717 = vpop.f32.mrb[0].mxu0
        %v718 = vadd.f32 %v332, %v717
        %719 = vdwg.mxu0
        %720 = vmatprep.subr.bf16.mxu0 %v382
        %721 = vmatpush1.bf16.msra.mxu0 %v379
        %722 = vmatprep.subr.bf16.mxu0 0
        %723 = vmatpush1.bf16.msra.mxu0 0
        %724 = vmatprep.subr.bf16.mxu0 0
        %725 = vmatpush1.bf16.msra.mxu0 0
        %726 = vmatprep.subr.bf16.mxu0 0
        %727 = vmatpush1.bf16.msra.mxu0 0
        %728 = vmatprep.subr.bf16.mxu0 0
        %729 = vmatpush1.bf16.msra.mxu0 0
        %730 = vmatprep.subr.bf16.mxu0 0
        %731 = vmatpush1.bf16.msra.mxu0 0
        %732 = vmatprep.subr.bf16.mxu0 0
        %733 = vmatpush1.bf16.msra.mxu0 0
        %734 = vmatprep.subr.bf16.mxu0 0
        %735 = vmatpush1.bf16.msra.mxu0 0
        %736 = vmatprep.subr.bf16.mxu0 0
        %737 = vmatpush1.bf16.msra.mxu0 0
        %738 = vmatprep.subr.bf16.mxu0 0
        %739 = vmatpush1.bf16.msra.mxu0 0
        %740 = vmatprep.subr.bf16.mxu0 0
        %741 = vmatpush1.bf16.msra.mxu0 0
        %742 = vmatprep.subr.bf16.mxu0 0
        %743 = vmatpush1.bf16.msra.mxu0 0
        %744 = vmatprep.subr.bf16.mxu0 0
        %745 = vmatpush1.bf16.msra.mxu0 0
        %746 = vmatprep.subr.bf16.mxu0 0
        %747 = vmatpush1.bf16.msra.mxu0 0
        %748 = vmatprep.subr.bf16.mxu0 0
        %749 = vmatpush1.bf16.msra.mxu0 0
        %750 = vmatprep.subr.bf16.mxu0 0
        %751 = vmatpush1.bf16.msra.mxu0 0
        %752 = vmatprep.mubr.bf16.mxu0 0
        %753 = vmatmul.mubr.bf16.gmra.mrb[0].mxu0 %v336
        %v754 = vpop.f32.mrb[0].mxu0
        %v755 = vadd.f32 %v317, %v754
        %v756 = vpop.f32.mrb[0].mxu0
        %v757 = vadd.f32 %v317, %v756
        %v758 = vpop.f32.mrb[0].mxu0
        %v759 = vadd.f32 %v322, %v758
        %v760 = vpop.f32.mrb[0].mxu0
        %v761 = vadd.f32 %v322, %v760
        %762 = vmatprep.mubr.bf16.mxu0 0
        %763 = vmatmul.mubr.bf16.gmra.mrb[0].mxu0 %v339
        %v764 = vpop.f32.mrb[0].mxu0
        %v765 = vadd.f32 %v327, %v764
        %v766 = vpop.f32.mrb[0].mxu0
        %v767 = vadd.f32 %v327, %v766
        %v768 = vpop.f32.mrb[0].mxu0
        %v769 = vadd.f32 %v332, %v768
        %v770 = vpop.f32.mrb[0].mxu0
        %v771 = vadd.f32 %v332, %v770
        %772 = vdwg.mxu0
        %773 = vmatprep.subr.bf16.mxu0 %v388
        %774 = vmatpush1.bf16.msra.mxu0 %v385
        %775 = vmatprep.subr.bf16.mxu0 0
        %776 = vmatpush1.bf16.msra.mxu0 0
        %777 = vmatprep.subr.bf16.mxu0 0
        %778 = vmatpush1.bf16.msra.mxu0 0
        %779 = vmatprep.subr.bf16.mxu0 0
        %780 = vmatpush1.bf16.msra.mxu0 0
        %781 = vmatprep.subr.bf16.mxu0 0
        %782 = vmatpush1.bf16.msra.mxu0 0
        %783 = vmatprep.subr.bf16.mxu0 0
        %784 = vmatpush1.bf16.msra.mxu0 0
        %785 = vmatprep.subr.bf16.mxu0 0
        %786 = vmatpush1.bf16.msra.mxu0 0
        %787 = vmatprep.subr.bf16.mxu0 0
        %788 = vmatpush1.bf16.msra.mxu0 0
        %789 = vmatprep.subr.bf16.mxu0 0
        %790 = vmatpush1.bf16.msra.mxu0 0
        %791 = vmatprep.subr.bf16.mxu0 0
        %792 = vmatpush1.bf16.msra.mxu0 0
        %793 = vmatprep.subr.bf16.mxu0 0
        %794 = vmatpush1.bf16.msra.mxu0 0
        %795 = vmatprep.subr.bf16.mxu0 0
        %796 = vmatpush1.bf16.msra.mxu0 0
        %797 = vmatprep.subr.bf16.mxu0 0
        %798 = vmatpush1.bf16.msra.mxu0 0
        %799 = vmatprep.subr.bf16.mxu0 0
        %800 = vmatpush1.bf16.msra.mxu0 0
        %801 = vmatprep.subr.bf16.mxu0 0
        %802 = vmatpush1.bf16.msra.mxu0 0
        %803 = vmatprep.subr.bf16.mxu0 0
        %804 = vmatpush1.bf16.msra.mxu0 0
        %805 = vmatprep.mubr.bf16.mxu0 0
        %806 = vmatmul.mubr.bf16.gmra.mrb[0].mxu0 %v336
        %v807 = vpop.f32.mrb[0].mxu0
        %v808 = vadd.f32 %v317, %v807
        %v809 = vpop.f32.mrb[0].mxu0
        %v810 = vadd.f32 %v317, %v809
        %v811 = vpop.f32.mrb[0].mxu0
        %v812 = vadd.f32 %v322, %v811
        %v813 = vpop.f32.mrb[0].mxu0
        %v814 = vadd.f32 %v322, %v813
        %815 = vmatprep.mubr.bf16.mxu0 0
        %816 = vmatmul.mubr.bf16.gmra.mrb[0].mxu0 %v339
        %v817 = vpop.f32.mrb[0].mxu0
        %v818 = vadd.f32 %v327, %v817
        %v819 = vpop.f32.mrb[0].mxu0
        %v820 = vadd.f32 %v327, %v819
        %v821 = vpop.f32.mrb[0].mxu0
        %v822 = vadd.f32 %v332, %v821
        %v823 = vpop.f32.mrb[0].mxu0
        %v824 = vadd.f32 %v332, %v823
        %825 = vdwg.mxu0
        %826 = vmatprep.subr.bf16.mxu0 %v394
        %827 = vmatpush1.bf16.msra.mxu0 %v391
        %828 = vmatprep.subr.bf16.mxu0 0
        %829 = vmatpush1.bf16.msra.mxu0 0
        %830 = vmatprep.subr.bf16.mxu0 0
        %831 = vmatpush1.bf16.msra.mxu0 0
        %832 = vmatprep.subr.bf16.mxu0 0
        %833 = vmatpush1.bf16.msra.mxu0 0
        %834 = vmatprep.subr.bf16.mxu0 0
        %835 = vmatpush1.bf16.msra.mxu0 0
        %836 = vmatprep.subr.bf16.mxu0 0
        %837 = vmatpush1.bf16.msra.mxu0 0
        %838 = vmatprep.subr.bf16.mxu0 0
        %839 = vmatpush1.bf16.msra.mxu0 0
        %840 = vmatprep.subr.bf16.mxu0 0
        %841 = vmatpush1.bf16.msra.mxu0 0
        %842 = vmatprep.subr.bf16.mxu0 0
        %843 = vmatpush1.bf16.msra.mxu0 0
        %844 = vmatprep.subr.bf16.mxu0 0
        %845 = vmatpush1.bf16.msra.mxu0 0
        %846 = vmatprep.subr.bf16.mxu0 0
        %847 = vmatpush1.bf16.msra.mxu0 0
        %848 = vmatprep.subr.bf16.mxu0 0
        %849 = vmatpush1.bf16.msra.mxu0 0
        %850 = vmatprep.subr.bf16.mxu0 0
        %851 = vmatpush1.bf16.msra.mxu0 0
        %852 = vmatprep.subr.bf16.mxu0 0
        %853 = vmatpush1.bf16.msra.mxu0 0
        %854 = vmatprep.subr.bf16.mxu0 0
        %855 = vmatpush1.bf16.msra.mxu0 0
        %856 = vmatprep.subr.bf16.mxu0 0
        %857 = vmatpush1.bf16.msra.mxu0 0
        %858 = vmatprep.mubr.bf16.mxu0 0
        %859 = vmatmul.mubr.bf16.gmra.mrb[0].mxu0 %v336
        %v860 = vpop.f32.mrb[0].mxu0
        %v861 = vadd.f32 %v317, %v860
        %v862 = vpop.f32.mrb[0].mxu0
        %v863 = vadd.f32 %v317, %v862
        %v864 = vpop.f32.mrb[0].mxu0
        %v865 = vadd.f32 %v322, %v864
        %v866 = vpop.f32.mrb[0].mxu0
        %v867 = vadd.f32 %v322, %v866
        %868 = vmatprep.mubr.bf16.mxu0 0
        %869 = vmatmul.mubr.bf16.gmra.mrb[0].mxu0 %v339
        %v870 = vpop.f32.mrb[0].mxu0
        %v871 = vadd.f32 %v327, %v870
        %v872 = vpop.f32.mrb[0].mxu0
        %v873 = vadd.f32 %v327, %v872
        %v874 = vpop.f32.mrb[0].mxu0
        %v875 = vadd.f32 %v332, %v874
        %v876 = vpop.f32.mrb[0].mxu0
        %v877 = vadd.f32 %v332, %v876
        %878 = vdwg.mxu0
        %879 = vmatprep.subr.bf16.mxu0 %v400
        %880 = vmatpush1.bf16.msra.mxu0 %v397
        %881 = vmatprep.subr.bf16.mxu0 0
        %882 = vmatpush1.bf16.msra.mxu0 0
        %883 = vmatprep.subr.bf16.mxu0 0
        %884 = vmatpush1.bf16.msra.mxu0 0
        %885 = vmatprep.subr.bf16.mxu0 0
        %886 = vmatpush1.bf16.msra.mxu0 0
        %887 = vmatprep.subr.bf16.mxu0 0
        %888 = vmatpush1.bf16.msra.mxu0 0
        %889 = vmatprep.subr.bf16.mxu0 0
        %890 = vmatpush1.bf16.msra.mxu0 0
        %891 = vmatprep.subr.bf16.mxu0 0
        %892 = vmatpush1.bf16.msra.mxu0 0
        %893 = vmatprep.subr.bf16.mxu0 0
        %894 = vmatpush1.bf16.msra.mxu0 0
        %895 = vmatprep.subr.bf16.mxu0 0
        %896 = vmatpush1.bf16.msra.mxu0 0
        %897 = vmatprep.subr.bf16.mxu0 0
        %898 = vmatpush1.bf16.msra.mxu0 0
        %899 = vmatprep.subr.bf16.mxu0 0
        %900 = vmatpush1.bf16.msra.mxu0 0
        %901 = vmatprep.subr.bf16.mxu0 0
        %902 = vmatpush1.bf16.msra.mxu0 0
        %903 = vmatprep.subr.bf16.mxu0 0
        %904 = vmatpush1.bf16.msra.mxu0 0
        %905 = vmatprep.subr.bf16.mxu0 0
        %906 = vmatpush1.bf16.msra.mxu0 0
        %907 = vmatprep.subr.bf16.mxu0 0
        %908 = vmatpush1.bf16.msra.mxu0 0
        %909 = vmatprep.subr.bf16.mxu0 0
        %910 = vmatpush1.bf16.msra.mxu0 0
        %911 = vmatprep.mubr.bf16.mxu0 0
        %912 = vmatmul.mubr.bf16.gmra.mrb[0].mxu0 %v336
        %v913 = vpop.f32.mrb[0].mxu0
        %v914 = vadd.f32 %v317, %v913
        %v915 = vpop.f32.mrb[0].mxu0
        %v916 = vadd.f32 %v317, %v915
        %v917 = vpop.f32.mrb[0].mxu0
        %v918 = vadd.f32 %v322, %v917
        %v919 = vpop.f32.mrb[0].mxu0
        %v920 = vadd.f32 %v322, %v919
        %921 = vmatprep.mubr.bf16.mxu0 0
        %922 = vmatmul.mubr.bf16.gmra.mrb[0].mxu0 %v339
        %v923 = vpop.f32.mrb[0].mxu0
        %v924 = vadd.f32 %v327, %v923
        %v925 = vpop.f32.mrb[0].mxu0
        %v926 = vadd.f32 %v327, %v925
        %v927 = vpop.f32.mrb[0].mxu0
        %v928 = vadd.f32 %v332, %v927
        %v929 = vpop.f32.mrb[0].mxu0
        %v930 = vadd.f32 %v332, %v929
        %931 = vdwg.mxu0
        %v932 = vmax.f32 %v437, 0.0
        %v933 = vmax.f32 %v439, 0.0
        %v934 = vmax.f32 %v490, 0.0
        %v935 = vmax.f32 %v492, 0.0
        %v936 = vmax.f32 %v543, 0.0
        %v937 = vmax.f32 %v545, 0.0
        %v938 = vmax.f32 %v596, 0.0
        %v939 = vmax.f32 %v598, 0.0
        %v940 = vmax.f32 %v649, 0.0
        %v941 = vmax.f32 %v651, 0.0
        %v942 = vmax.f32 %v702, 0.0
        %v943 = vmax.f32 %v704, 0.0
        %v944 = vmax.f32 %v755, 0.0
        %v945 = vmax.f32 %v757, 0.0
        %v946 = vmax.f32 %v808, 0.0
        %v947 = vmax.f32 %v810, 0.0
        %v948 = vmax.f32 %v861, 0.0
        %v949 = vmax.f32 %v863, 0.0
        %v950 = vmax.f32 %v914, 0.0
        %v951 = vmax.f32 %v916, 0.0
        %v952 = vmax.f32 %v441, 0.0
        %v953 = vmax.f32 %v443, 0.0
        %v954 = vmax.f32 %v494, 0.0
        %v955 = vmax.f32 %v496, 0.0
        %v956 = vmax.f32 %v547, 0.0
        %v957 = vmax.f32 %v549, 0.0
        %v958 = vmax.f32 %v600, 0.0
        %v959 = vmax.f32 %v602, 0.0
        %v960 = vmax.f32 %v653, 0.0
        %v961 = vmax.f32 %v655, 0.0
        %v962 = vmax.f32 %v706, 0.0
        %v963 = vmax.f32 %v708, 0.0
        %v964 = vmax.f32 %v759, 0.0
        %v965 = vmax.f32 %v761, 0.0
        %v966 = vmax.f32 %v812, 0.0
        %v967 = vmax.f32 %v814, 0.0
        %v968 = vmax.f32 %v865, 0.0
        %v969 = vmax.f32 %v867, 0.0
        %v970 = vmax.f32 %v918, 0.0
        %v971 = vmax.f32 %v920, 0.0
        %v972 = vmax.f32 %v447, 0.0
        %v973 = vmax.f32 %v449, 0.0
        %v974 = vmax.f32 %v500, 0.0
        %v975 = vmax.f32 %v502, 0.0
        %v976 = vmax.f32 %v553, 0.0
        %v977 = vmax.f32 %v555, 0.0
        %v978 = vmax.f32 %v606, 0.0
        %v979 = vmax.f32 %v608, 0.0
        %v980 = vmax.f32 %v659, 0.0
        %v981 = vmax.f32 %v661, 0.0
        %v982 = vmax.f32 %v712, 0.0
        %v983 = vmax.f32 %v714, 0.0
        %v984 = vmax.f32 %v765, 0.0
        %v985 = vmax.f32 %v767, 0.0
        %v986 = vmax.f32 %v818, 0.0
        %v987 = vmax.f32 %v820, 0.0
        %v988 = vmax.f32 %v871, 0.0
        %v989 = vmax.f32 %v873, 0.0
        %v990 = vmax.f32 %v924, 0.0
        %v991 = vmax.f32 %v926, 0.0
        %v992 = vmax.f32 %v451, 0.0
        %v993 = vmax.f32 %v453, 0.0
        %v994 = vmax.f32 %v504, 0.0
        %v995 = vmax.f32 %v506, 0.0
        %v996 = vmax.f32 %v557, 0.0
        %v997 = vmax.f32 %v559, 0.0
        %v998 = vmax.f32 %v610, 0.0
        %v999 = vmax.f32 %v612, 0.0
        %v1000 = vmax.f32 %v663, 0.0
        %v1001 = vmax.f32 %v665, 0.0
        %v1002 = vmax.f32 %v716, 0.0
        %v1003 = vmax.f32 %v718, 0.0
        %v1004 = vmax.f32 %v769, 0.0
        %v1005 = vmax.f32 %v771, 0.0
        %v1006 = vmax.f32 %v822, 0.0
        %v1007 = vmax.f32 %v824, 0.0
        %v1008 = vmax.f32 %v875, 0.0
        %v1009 = vmax.f32 %v877, 0.0
        %v1010 = vmax.f32 %v928, 0.0
        %v1011 = vmax.f32 %v930, 0.0
        %v1012 = vld [vmem:[%s3] sm:$0x3]
        %v1013 = vpack.c.bf16 %v1012, %v1012
        %v1014 = vpack.c.bf16 %v952, %v932
        %v1015 = vpack.c.bf16 %v953, %v933
        %v1016 = vpack.c.bf16 %v954, %v934
        %v1017 = vpack.c.bf16 %v955, %v935
        %v1018 = vpack.c.bf16 %v956, %v936
        %v1019 = vpack.c.bf16 %v957, %v937
        %v1020 = vpack.c.bf16 %v958, %v938
        %v1021 = vpack.c.bf16 %v959, %v939
        %v1022 = vpack.c.bf16 %v960, %v940
        %v1023 = vpack.c.bf16 %v961, %v941
        %v1024 = vpack.c.bf16 %v962, %v942
        %v1025 = vpack.c.bf16 %v963, %v943
        %v1026 = vpack.c.bf16 %v964, %v944
        %v1027 = vpack.c.bf16 %v965, %v945
        %v1028 = vpack.c.bf16 %v966, %v946
        %v1029 = vpack.c.bf16 %v967, %v947
        %v1030 = vpack.c.bf16 %v968, %v948
        %v1031 = vpack.c.bf16 %v969, %v949
        %v1032 = vpack.c.bf16 %v970, %v950
        %v1033 = vpack.c.bf16 %v971, %v951
        %v1034 = vpack.c.bf16 %v992, %v972
        %v1035 = vpack.c.bf16 %v993, %v973
        %v1036 = vpack.c.bf16 %v994, %v974
        %v1037 = vpack.c.bf16 %v995, %v975
        %v1038 = vpack.c.bf16 %v996, %v976
        %v1039 = vpack.c.bf16 %v997, %v977
        %v1040 = vpack.c.bf16 %v998, %v978
        %v1041 = vpack.c.bf16 %v999, %v979
        %v1042 = vpack.c.bf16 %v1000, %v980
        %v1043 = vpack.c.bf16 %v1001, %v981
        %v1044 = vpack.c.bf16 %v1002, %v982
        %v1045 = vpack.c.bf16 %v1003, %v983
        %v1046 = vpack.c.bf16 %v1004, %v984
        %v1047 = vpack.c.bf16 %v1005, %v985
        %v1048 = vpack.c.bf16 %v1006, %v986
        %v1049 = vpack.c.bf16 %v1007, %v987
        %v1050 = vpack.c.bf16 %v1008, %v988
        %v1051 = vpack.c.bf16 %v1009, %v989
        %v1052 = vpack.c.bf16 %v1010, %v990
        %v1053 = vpack.c.bf16 %v1011, %v991
        %v1054 = vld [vmem:[%s4] sm:$0x3]
        %1056 = vset.pattern.permute.xlu0 0
        %1057 = vperm.xlu0 %1056, %v1054
        %v1058 = vpop.permute.xlu0 %1057
        %vm1060 = vcmask 261120
        %v1062 = vsel %vm1060, %v1013, 0
        %1064 = vmatprep.subr.bf16.mxu0 %v1015
        %1065 = vmatpush1.bf16.msra.mxu0 %v1014
        %1066 = vmatprep.subr.bf16.mxu0 %v1035
        %1067 = vmatpush1.bf16.msra.mxu0 %v1034
        %1068 = vmatprep.subr.bf16.mxu0 0
        %1069 = vmatpush1.bf16.msra.mxu0 0
        %1070 = vmatprep.subr.bf16.mxu0 0
        %1071 = vmatpush1.bf16.msra.mxu0 0
        %1072 = vmatprep.subr.bf16.mxu0 0
        %1073 = vmatpush1.bf16.msra.mxu0 0
        %1074 = vmatprep.subr.bf16.mxu0 0
        %1075 = vmatpush1.bf16.msra.mxu0 0
        %1076 = vmatprep.subr.bf16.mxu0 0
        %1077 = vmatpush1.bf16.msra.mxu0 0
        %1078 = vmatprep.subr.bf16.mxu0 0
        %1079 = vmatpush1.bf16.msra.mxu0 0
        %1080 = vmatprep.subr.bf16.mxu0 0
        %1081 = vmatpush1.bf16.msra.mxu0 0
        %1082 = vmatprep.subr.bf16.mxu0 0
        %1083 = vmatpush1.bf16.msra.mxu0 0
        %1084 = vmatprep.subr.bf16.mxu0 0
        %1085 = vmatpush1.bf16.msra.mxu0 0
        %1086 = vmatprep.subr.bf16.mxu0 0
        %1087 = vmatpush1.bf16.msra.mxu0 0
        %1088 = vmatprep.subr.bf16.mxu0 0
        %1089 = vmatpush1.bf16.msra.mxu0 0
        %1090 = vmatprep.subr.bf16.mxu0 0
        %1091 = vmatpush1.bf16.msra.mxu0 0
        %1092 = vmatprep.subr.bf16.mxu0 0
        %1093 = vmatpush1.bf16.msra.mxu0 0
        %1094 = vmatprep.subr.bf16.mxu0 0
        %1095 = vmatpush1.bf16.msra.mxu0 0
        %1096 = vmatprep.mubr.bf16.mxu0 0
        %1097 = vmatmul.mubr.bf16.gmra.mrb[0].mxu0 %v1062
        %v1098 = vpop.f32.mrb[0].mxu0
        %v1099 = vadd.f32 %v1058, %v1098
        %v1100 = vpop.f32.mrb[0].mxu0
        %v1101 = vadd.f32 %v1058, %v1100
        %v1102 = vpop.f32.mrb[0].mxu0
        %v1103 = vpop.f32.mrb[0].mxu0
        %1104 = vdwg.mxu0
        %1105 = vmatprep.subr.bf16.mxu0 %v1017
        %1106 = vmatpush1.bf16.msra.mxu0 %v1016
        %1107 = vmatprep.subr.bf16.mxu0 %v1037
        %1108 = vmatpush1.bf16.msra.mxu0 %v1036
        %1109 = vmatprep.subr.bf16.mxu0 0
        %1110 = vmatpush1.bf16.msra.mxu0 0
        %1111 = vmatprep.subr.bf16.mxu0 0
        %1112 = vmatpush1.bf16.msra.mxu0 0
        %1113 = vmatprep.subr.bf16.mxu0 0
        %1114 = vmatpush1.bf16.msra.mxu0 0
        %1115 = vmatprep.subr.bf16.mxu0 0
        %1116 = vmatpush1.bf16.msra.mxu0 0
        %1117 = vmatprep.subr.bf16.mxu0 0
        %1118 = vmatpush1.bf16.msra.mxu0 0
        %1119 = vmatprep.subr.bf16.mxu0 0
        %1120 = vmatpush1.bf16.msra.mxu0 0
        %1121 = vmatprep.subr.bf16.mxu0 0
        %1122 = vmatpush1.bf16.msra.mxu0 0
        %1123 = vmatprep.subr.bf16.mxu0 0
        %1124 = vmatpush1.bf16.msra.mxu0 0
        %1125 = vmatprep.subr.bf16.mxu0 0
        %1126 = vmatpush1.bf16.msra.mxu0 0
        %1127 = vmatprep.subr.bf16.mxu0 0
        %1128 = vmatpush1.bf16.msra.mxu0 0
        %1129 = vmatprep.subr.bf16.mxu0 0
        %1130 = vmatpush1.bf16.msra.mxu0 0
        %1131 = vmatprep.subr.bf16.mxu0 0
        %1132 = vmatpush1.bf16.msra.mxu0 0
        %1133 = vmatprep.subr.bf16.mxu0 0
        %1134 = vmatpush1.bf16.msra.mxu0 0
        %1135 = vmatprep.subr.bf16.mxu0 0
        %1136 = vmatpush1.bf16.msra.mxu0 0
        %1137 = vmatprep.mubr.bf16.mxu0 0
        %1138 = vmatmul.mubr.bf16.gmra.mrb[0].mxu0 %v1062
        %v1139 = vpop.f32.mrb[0].mxu0
        %v1140 = vadd.f32 %v1058, %v1139
        %v1141 = vpop.f32.mrb[0].mxu0
        %v1142 = vadd.f32 %v1058, %v1141
        %v1143 = vpop.f32.mrb[0].mxu0
        %v1144 = vpop.f32.mrb[0].mxu0
        %1145 = vdwg.mxu0
        %1146 = vmatprep.subr.bf16.mxu0 %v1019
        %1147 = vmatpush1.bf16.msra.mxu0 %v1018
        %1148 = vmatprep.subr.bf16.mxu0 %v1039
        %1149 = vmatpush1.bf16.msra.mxu0 %v1038
        %1150 = vmatprep.subr.bf16.mxu0 0
        %1151 = vmatpush1.bf16.msra.mxu0 0
        %1152 = vmatprep.subr.bf16.mxu0 0
        %1153 = vmatpush1.bf16.msra.mxu0 0
        %1154 = vmatprep.subr.bf16.mxu0 0
        %1155 = vmatpush1.bf16.msra.mxu0 0
        %1156 = vmatprep.subr.bf16.mxu0 0
        %1157 = vmatpush1.bf16.msra.mxu0 0
        %1158 = vmatprep.subr.bf16.mxu0 0
        %1159 = vmatpush1.bf16.msra.mxu0 0
        %1160 = vmatprep.subr.bf16.mxu0 0
        %1161 = vmatpush1.bf16.msra.mxu0 0
        %1162 = vmatprep.subr.bf16.mxu0 0
        %1163 = vmatpush1.bf16.msra.mxu0 0
        %1164 = vmatprep.subr.bf16.mxu0 0
        %1165 = vmatpush1.bf16.msra.mxu0 0
        %1166 = vmatprep.subr.bf16.mxu0 0
        %1167 = vmatpush1.bf16.msra.mxu0 0
        %1168 = vmatprep.subr.bf16.mxu0 0
        %1169 = vmatpush1.bf16.msra.mxu0 0
        %1170 = vmatprep.subr.bf16.mxu0 0
        %1171 = vmatpush1.bf16.msra.mxu0 0
        %1172 = vmatprep.subr.bf16.mxu0 0
        %1173 = vmatpush1.bf16.msra.mxu0 0
        %1174 = vmatprep.subr.bf16.mxu0 0
        %1175 = vmatpush1.bf16.msra.mxu0 0
        %1176 = vmatprep.subr.bf16.mxu0 0
        %1177 = vmatpush1.bf16.msra.mxu0 0
        %1178 = vmatprep.mubr.bf16.mxu0 0
        %1179 = vmatmul.mubr.bf16.gmra.mrb[0].mxu0 %v1062
        %v1180 = vpop.f32.mrb[0].mxu0
        %v1181 = vadd.f32 %v1058, %v1180
        %v1182 = vpop.f32.mrb[0].mxu0
        %v1183 = vadd.f32 %v1058, %v1182
        %v1184 = vpop.f32.mrb[0].mxu0
        %v1185 = vpop.f32.mrb[0].mxu0
        %1186 = vdwg.mxu0
        %1187 = vmatprep.subr.bf16.mxu0 %v1021
        %1188 = vmatpush1.bf16.msra.mxu0 %v1020
        %1189 = vmatprep.subr.bf16.mxu0 %v1041
        %1190 = vmatpush1.bf16.msra.mxu0 %v1040
        %1191 = vmatprep.subr.bf16.mxu0 0
        %1192 = vmatpush1.bf16.msra.mxu0 0
        %1193 = vmatprep.subr.bf16.mxu0 0
        %1194 = vmatpush1.bf16.msra.mxu0 0
        %1195 = vmatprep.subr.bf16.mxu0 0
        %1196 = vmatpush1.bf16.msra.mxu0 0
        %1197 = vmatprep.subr.bf16.mxu0 0
        %1198 = vmatpush1.bf16.msra.mxu0 0
        %1199 = vmatprep.subr.bf16.mxu0 0
        %1200 = vmatpush1.bf16.msra.mxu0 0
        %1201 = vmatprep.subr.bf16.mxu0 0
        %1202 = vmatpush1.bf16.msra.mxu0 0
        %1203 = vmatprep.subr.bf16.mxu0 0
        %1204 = vmatpush1.bf16.msra.mxu0 0
        %1205 = vmatprep.subr.bf16.mxu0 0
        %1206 = vmatpush1.bf16.msra.mxu0 0
        %1207 = vmatprep.subr.bf16.mxu0 0
        %1208 = vmatpush1.bf16.msra.mxu0 0
        %1209 = vmatprep.subr.bf16.mxu0 0
        %1210 = vmatpush1.bf16.msra.mxu0 0
        %1211 = vmatprep.subr.bf16.mxu0 0
        %1212 = vmatpush1.bf16.msra.mxu0 0
        %1213 = vmatprep.subr.bf16.mxu0 0
        %1214 = vmatpush1.bf16.msra.mxu0 0
        %1215 = vmatprep.subr.bf16.mxu0 0
        %1216 = vmatpush1.bf16.msra.mxu0 0
        %1217 = vmatprep.subr.bf16.mxu0 0
        %1218 = vmatpush1.bf16.msra.mxu0 0
        %1219 = vmatprep.mubr.bf16.mxu0 0
        %1220 = vmatmul.mubr.bf16.gmra.mrb[0].mxu0 %v1062
        %v1221 = vpop.f32.mrb[0].mxu0
        %v1222 = vadd.f32 %v1058, %v1221
        %v1223 = vpop.f32.mrb[0].mxu0
        %v1224 = vadd.f32 %v1058, %v1223
        %v1225 = vpop.f32.mrb[0].mxu0
        %v1226 = vpop.f32.mrb[0].mxu0
        %1227 = vdwg.mxu0
        %1228 = vmatprep.subr.bf16.mxu0 %v1023
        %1229 = vmatpush1.bf16.msra.mxu0 %v1022
        %1230 = vmatprep.subr.bf16.mxu0 %v1043
        %1231 = vmatpush1.bf16.msra.mxu0 %v1042
        %1232 = vmatprep.subr.bf16.mxu0 0
        %1233 = vmatpush1.bf16.msra.mxu0 0
        %1234 = vmatprep.subr.bf16.mxu0 0
        %1235 = vmatpush1.bf16.msra.mxu0 0
        %1236 = vmatprep.subr.bf16.mxu0 0
        %1237 = vmatpush1.bf16.msra.mxu0 0
        %1238 = vmatprep.subr.bf16.mxu0 0
        %1239 = vmatpush1.bf16.msra.mxu0 0
        %1240 = vmatprep.subr.bf16.mxu0 0
        %1241 = vmatpush1.bf16.msra.mxu0 0
        %1242 = vmatprep.subr.bf16.mxu0 0
        %1243 = vmatpush1.bf16.msra.mxu0 0
        %1244 = vmatprep.subr.bf16.mxu0 0
        %1245 = vmatpush1.bf16.msra.mxu0 0
        %1246 = vmatprep.subr.bf16.mxu0 0
        %1247 = vmatpush1.bf16.msra.mxu0 0
        %1248 = vmatprep.subr.bf16.mxu0 0
        %1249 = vmatpush1.bf16.msra.mxu0 0
        %1250 = vmatprep.subr.bf16.mxu0 0
        %1251 = vmatpush1.bf16.msra.mxu0 0
        %1252 = vmatprep.subr.bf16.mxu0 0
        %1253 = vmatpush1.bf16.msra.mxu0 0
        %1254 = vmatprep.subr.bf16.mxu0 0
        %1255 = vmatpush1.bf16.msra.mxu0 0
        %1256 = vmatprep.subr.bf16.mxu0 0
        %1257 = vmatpush1.bf16.msra.mxu0 0
        %1258 = vmatprep.subr.bf16.mxu0 0
        %1259 = vmatpush1.bf16.msra.mxu0 0
        %1260 = vmatprep.mubr.bf16.mxu0 0
        %1261 = vmatmul.mubr.bf16.gmra.mrb[0].mxu0 %v1062
        %v1262 = vpop.f32.mrb[0].mxu0
        %v1263 = vadd.f32 %v1058, %v1262
        %v1264 = vpop.f32.mrb[0].mxu0
        %v1265 = vadd.f32 %v1058, %v1264
        %v1266 = vpop.f32.mrb[0].mxu0
        %v1267 = vpop.f32.mrb[0].mxu0
        %1268 = vdwg.mxu0
        %1269 = vmatprep.subr.bf16.mxu0 %v1025
        %1270 = vmatpush1.bf16.msra.mxu0 %v1024
        %1271 = vmatprep.subr.bf16.mxu0 %v1045
        %1272 = vmatpush1.bf16.msra.mxu0 %v1044
        %1273 = vmatprep.subr.bf16.mxu0 0
        %1274 = vmatpush1.bf16.msra.mxu0 0
        %1275 = vmatprep.subr.bf16.mxu0 0
        %1276 = vmatpush1.bf16.msra.mxu0 0
        %1277 = vmatprep.subr.bf16.mxu0 0
        %1278 = vmatpush1.bf16.msra.mxu0 0
        %1279 = vmatprep.subr.bf16.mxu0 0
        %1280 = vmatpush1.bf16.msra.mxu0 0
        %1281 = vmatprep.subr.bf16.mxu0 0
        %1282 = vmatpush1.bf16.msra.mxu0 0
        %1283 = vmatprep.subr.bf16.mxu0 0
        %1284 = vmatpush1.bf16.msra.mxu0 0
        %1285 = vmatprep.subr.bf16.mxu0 0
        %1286 = vmatpush1.bf16.msra.mxu0 0
        %1287 = vmatprep.subr.bf16.mxu0 0
        %1288 = vmatpush1.bf16.msra.mxu0 0
        %1289 = vmatprep.subr.bf16.mxu0 0
        %1290 = vmatpush1.bf16.msra.mxu0 0
        %1291 = vmatprep.subr.bf16.mxu0 0
        %1292 = vmatpush1.bf16.msra.mxu0 0
        %1293 = vmatprep.subr.bf16.mxu0 0
        %1294 = vmatpush1.bf16.msra.mxu0 0
        %1295 = vmatprep.subr.bf16.mxu0 0
        %1296 = vmatpush1.bf16.msra.mxu0 0
        %1297 = vmatprep.subr.bf16.mxu0 0
        %1298 = vmatpush1.bf16.msra.mxu0 0
        %1299 = vmatprep.subr.bf16.mxu0 0
        %1300 = vmatpush1.bf16.msra.mxu0 0
        %1301 = vmatprep.mubr.bf16.mxu0 0
        %1302 = vmatmul.mubr.bf16.gmra.mrb[0].mxu0 %v1062
        %v1303 = vpop.f32.mrb[0].mxu0
        %v1304 = vadd.f32 %v1058, %v1303
        %v1305 = vpop.f32.mrb[0].mxu0
        %v1306 = vadd.f32 %v1058, %v1305
        %v1307 = vpop.f32.mrb[0].mxu0
        %v1308 = vpop.f32.mrb[0].mxu0
        %1309 = vdwg.mxu0
        %1310 = vmatprep.subr.bf16.mxu0 %v1027
        %1311 = vmatpush1.bf16.msra.mxu0 %v1026
        %1312 = vmatprep.subr.bf16.mxu0 %v1047
        %1313 = vmatpush1.bf16.msra.mxu0 %v1046
        %1314 = vmatprep.subr.bf16.mxu0 0
        %1315 = vmatpush1.bf16.msra.mxu0 0
        %1316 = vmatprep.subr.bf16.mxu0 0
        %1317 = vmatpush1.bf16.msra.mxu0 0
        %1318 = vmatprep.subr.bf16.mxu0 0
        %1319 = vmatpush1.bf16.msra.mxu0 0
        %1320 = vmatprep.subr.bf16.mxu0 0
        %1321 = vmatpush1.bf16.msra.mxu0 0
        %1322 = vmatprep.subr.bf16.mxu0 0
        %1323 = vmatpush1.bf16.msra.mxu0 0
        %1324 = vmatprep.subr.bf16.mxu0 0
        %1325 = vmatpush1.bf16.msra.mxu0 0
        %1326 = vmatprep.subr.bf16.mxu0 0
        %1327 = vmatpush1.bf16.msra.mxu0 0
        %1328 = vmatprep.subr.bf16.mxu0 0
        %1329 = vmatpush1.bf16.msra.mxu0 0
        %1330 = vmatprep.subr.bf16.mxu0 0
        %1331 = vmatpush1.bf16.msra.mxu0 0
        %1332 = vmatprep.subr.bf16.mxu0 0
        %1333 = vmatpush1.bf16.msra.mxu0 0
        %1334 = vmatprep.subr.bf16.mxu0 0
        %1335 = vmatpush1.bf16.msra.mxu0 0
        %1336 = vmatprep.subr.bf16.mxu0 0
        %1337 = vmatpush1.bf16.msra.mxu0 0
        %1338 = vmatprep.subr.bf16.mxu0 0
        %1339 = vmatpush1.bf16.msra.mxu0 0
        %1340 = vmatprep.subr.bf16.mxu0 0
        %1341 = vmatpush1.bf16.msra.mxu0 0
        %1342 = vmatprep.mubr.bf16.mxu0 0
        %1343 = vmatmul.mubr.bf16.gmra.mrb[0].mxu0 %v1062
        %v1344 = vpop.f32.mrb[0].mxu0
        %v1345 = vadd.f32 %v1058, %v1344
        %v1346 = vpop.f32.mrb[0].mxu0
        %v1347 = vadd.f32 %v1058, %v1346
        %v1348 = vpop.f32.mrb[0].mxu0
        %v1349 = vpop.f32.mrb[0].mxu0
        %1350 = vdwg.mxu0
        %1351 = vmatprep.subr.bf16.mxu0 %v1029
        %1352 = vmatpush1.bf16.msra.mxu0 %v1028
        %1353 = vmatprep.subr.bf16.mxu0 %v1049
        %1354 = vmatpush1.bf16.msra.mxu0 %v1048
        %1355 = vmatprep.subr.bf16.mxu0 0
        %1356 = vmatpush1.bf16.msra.mxu0 0
        %1357 = vmatprep.subr.bf16.mxu0 0
        %1358 = vmatpush1.bf16.msra.mxu0 0
        %1359 = vmatprep.subr.bf16.mxu0 0
        %1360 = vmatpush1.bf16.msra.mxu0 0
        %1361 = vmatprep.subr.bf16.mxu0 0
        %1362 = vmatpush1.bf16.msra.mxu0 0
        %1363 = vmatprep.subr.bf16.mxu0 0
        %1364 = vmatpush1.bf16.msra.mxu0 0
        %1365 = vmatprep.subr.bf16.mxu0 0
        %1366 = vmatpush1.bf16.msra.mxu0 0
        %1367 = vmatprep.subr.bf16.mxu0 0
        %1368 = vmatpush1.bf16.msra.mxu0 0
        %1369 = vmatprep.subr.bf16.mxu0 0
        %1370 = vmatpush1.bf16.msra.mxu0 0
        %1371 = vmatprep.subr.bf16.mxu0 0
        %1372 = vmatpush1.bf16.msra.mxu0 0
        %1373 = vmatprep.subr.bf16.mxu0 0
        %1374 = vmatpush1.bf16.msra.mxu0 0
        %1375 = vmatprep.subr.bf16.mxu0 0
        %1376 = vmatpush1.bf16.msra.mxu0 0
        %1377 = vmatprep.subr.bf16.mxu0 0
        %1378 = vmatpush1.bf16.msra.mxu0 0
        %1379 = vmatprep.subr.bf16.mxu0 0
        %1380 = vmatpush1.bf16.msra.mxu0 0
        %1381 = vmatprep.subr.bf16.mxu0 0
        %1382 = vmatpush1.bf16.msra.mxu0 0
        %1383 = vmatprep.mubr.bf16.mxu0 0
        %1384 = vmatmul.mubr.bf16.gmra.mrb[0].mxu0 %v1062
        %v1385 = vpop.f32.mrb[0].mxu0
        %v1386 = vadd.f32 %v1058, %v1385
        %v1387 = vpop.f32.mrb[0].mxu0
        %v1388 = vadd.f32 %v1058, %v1387
        %v1389 = vpop.f32.mrb[0].mxu0
        %v1390 = vpop.f32.mrb[0].mxu0
        %1391 = vdwg.mxu0
        %1392 = vmatprep.subr.bf16.mxu0 %v1031
        %1393 = vmatpush1.bf16.msra.mxu0 %v1030
        %1394 = vmatprep.subr.bf16.mxu0 %v1051
        %1395 = vmatpush1.bf16.msra.mxu0 %v1050
        %1396 = vmatprep.subr.bf16.mxu0 0
        %1397 = vmatpush1.bf16.msra.mxu0 0
        %1398 = vmatprep.subr.bf16.mxu0 0
        %1399 = vmatpush1.bf16.msra.mxu0 0
        %1400 = vmatprep.subr.bf16.mxu0 0
        %1401 = vmatpush1.bf16.msra.mxu0 0
        %1402 = vmatprep.subr.bf16.mxu0 0
        %1403 = vmatpush1.bf16.msra.mxu0 0
        %1404 = vmatprep.subr.bf16.mxu0 0
        %1405 = vmatpush1.bf16.msra.mxu0 0
        %1406 = vmatprep.subr.bf16.mxu0 0
        %1407 = vmatpush1.bf16.msra.mxu0 0
        %1408 = vmatprep.subr.bf16.mxu0 0
        %1409 = vmatpush1.bf16.msra.mxu0 0
        %1410 = vmatprep.subr.bf16.mxu0 0
        %1411 = vmatpush1.bf16.msra.mxu0 0
        %1412 = vmatprep.subr.bf16.mxu0 0
        %1413 = vmatpush1.bf16.msra.mxu0 0
        %1414 = vmatprep.subr.bf16.mxu0 0
        %1415 = vmatpush1.bf16.msra.mxu0 0
        %1416 = vmatprep.subr.bf16.mxu0 0
        %1417 = vmatpush1.bf16.msra.mxu0 0
        %1418 = vmatprep.subr.bf16.mxu0 0
        %1419 = vmatpush1.bf16.msra.mxu0 0
        %1420 = vmatprep.subr.bf16.mxu0 0
        %1421 = vmatpush1.bf16.msra.mxu0 0
        %1422 = vmatprep.subr.bf16.mxu0 0
        %1423 = vmatpush1.bf16.msra.mxu0 0
        %1424 = vmatprep.mubr.bf16.mxu0 0
        %1425 = vmatmul.mubr.bf16.gmra.mrb[0].mxu0 %v1062
        %v1426 = vpop.f32.mrb[0].mxu0
        %v1427 = vadd.f32 %v1058, %v1426
        %v1428 = vpop.f32.mrb[0].mxu0
        %v1429 = vadd.f32 %v1058, %v1428
        %v1430 = vpop.f32.mrb[0].mxu0
        %v1431 = vpop.f32.mrb[0].mxu0
        %1432 = vdwg.mxu0
        %1433 = vmatprep.subr.bf16.mxu0 %v1033
        %1434 = vmatpush1.bf16.msra.mxu0 %v1032
        %1435 = vmatprep.subr.bf16.mxu0 %v1053
        %1436 = vmatpush1.bf16.msra.mxu0 %v1052
        %1437 = vmatprep.subr.bf16.mxu0 0
        %1438 = vmatpush1.bf16.msra.mxu0 0
        %1439 = vmatprep.subr.bf16.mxu0 0
        %1440 = vmatpush1.bf16.msra.mxu0 0
        %1441 = vmatprep.subr.bf16.mxu0 0
        %1442 = vmatpush1.bf16.msra.mxu0 0
        %1443 = vmatprep.subr.bf16.mxu0 0
        %1444 = vmatpush1.bf16.msra.mxu0 0
        %1445 = vmatprep.subr.bf16.mxu0 0
        %1446 = vmatpush1.bf16.msra.mxu0 0
        %1447 = vmatprep.subr.bf16.mxu0 0
        %1448 = vmatpush1.bf16.msra.mxu0 0
        %1449 = vmatprep.subr.bf16.mxu0 0
        %1450 = vmatpush1.bf16.msra.mxu0 0
        %1451 = vmatprep.subr.bf16.mxu0 0
        %1452 = vmatpush1.bf16.msra.mxu0 0
        %1453 = vmatprep.subr.bf16.mxu0 0
        %1454 = vmatpush1.bf16.msra.mxu0 0
        %1455 = vmatprep.subr.bf16.mxu0 0
        %1456 = vmatpush1.bf16.msra.mxu0 0
        %1457 = vmatprep.subr.bf16.mxu0 0
        %1458 = vmatpush1.bf16.msra.mxu0 0
        %1459 = vmatprep.subr.bf16.mxu0 0
        %1460 = vmatpush1.bf16.msra.mxu0 0
        %1461 = vmatprep.subr.bf16.mxu0 0
        %1462 = vmatpush1.bf16.msra.mxu0 0
        %1463 = vmatprep.subr.bf16.mxu0 0
        %1464 = vmatpush1.bf16.msra.mxu0 0
        %1465 = vmatprep.mubr.bf16.mxu0 0
        %1466 = vmatmul.mubr.bf16.gmra.mrb[0].mxu0 %v1062
        %v1467 = vpop.f32.mrb[0].mxu0
        %v1468 = vadd.f32 %v1058, %v1467
        %v1469 = vpop.f32.mrb[0].mxu0
        %v1470 = vadd.f32 %v1058, %v1469
        %v1471 = vpop.f32.mrb[0].mxu0
        %v1472 = vpop.f32.mrb[0].mxu0
        %1473 = vdwg.mxu0
        %v1494 = vcombine.low %v1099, %v1101
        %v1495 = vcombine.low %v1140, %v1142
        %v1497 = vunpack.c.l.s4 1983009808
        %v1498 = vunpack.c.0.s8 %v1497
        %v1499 = vlaneseq
        %v1500 = vshrl.u32 %v1499, 7
        %v1501 = vsub.s32 %v1498, %v1500
        %v1502 = vrot.slane %v1494, %v1501
        %v1504 = vunpack.c.l.s4 1983009808
        %v1505 = vunpack.c.0.s8 %v1504
        %v1506 = vlaneseq
        %v1507 = vshrl.u32 %v1506, 7
        %v1508 = vsub.s32 %v1505, %v1507
        %v1509 = vrot.slane %v1495, %v1508
        %v1510 = vcombine.low %v1502, %v1509
        %v1511 = vcombine.low %v1181, %v1183
        %v1512 = vcombine.low %v1222, %v1224
        %v1514 = vunpack.c.l.s4 1983009808
        %v1515 = vunpack.c.0.s8 %v1514
        %v1516 = vlaneseq
        %v1517 = vshrl.u32 %v1516, 7
        %v1518 = vsub.s32 %v1515, %v1517
        %v1519 = vrot.slane %v1511, %v1518
        %v1521 = vunpack.c.l.s4 1983009808
        %v1522 = vunpack.c.0.s8 %v1521
        %v1523 = vlaneseq
        %v1524 = vshrl.u32 %v1523, 7
        %v1525 = vsub.s32 %v1522, %v1524
        %v1526 = vrot.slane %v1512, %v1525
        %v1527 = vcombine.low %v1519, %v1526
        %v1528 = vcombine.low %v1263, %v1265
        %v1529 = vcombine.low %v1304, %v1306
        %v1531 = vunpack.c.l.s4 1983009808
        %v1532 = vunpack.c.0.s8 %v1531
        %v1533 = vlaneseq
        %v1534 = vshrl.u32 %v1533, 7
        %v1535 = vsub.s32 %v1532, %v1534
        %v1536 = vrot.slane %v1528, %v1535
        %v1538 = vunpack.c.l.s4 1983009808
        %v1539 = vunpack.c.0.s8 %v1538
        %v1540 = vlaneseq
        %v1541 = vshrl.u32 %v1540, 7
        %v1542 = vsub.s32 %v1539, %v1541
        %v1543 = vrot.slane %v1529, %v1542
        %v1544 = vcombine.low %v1536, %v1543
        %v1545 = vcombine.low %v1345, %v1347
        %v1546 = vcombine.low %v1386, %v1388
        %v1548 = vunpack.c.l.s4 1983009808
        %v1549 = vunpack.c.0.s8 %v1548
        %v1550 = vlaneseq
        %v1551 = vshrl.u32 %v1550, 7
        %v1552 = vsub.s32 %v1549, %v1551
        %v1553 = vrot.slane %v1545, %v1552
        %v1555 = vunpack.c.l.s4 1983009808
        %v1556 = vunpack.c.0.s8 %v1555
        %v1557 = vlaneseq
        %v1558 = vshrl.u32 %v1557, 7
        %v1559 = vsub.s32 %v1556, %v1558
        %v1560 = vrot.slane %v1546, %v1559
        %v1561 = vcombine.low %v1553, %v1560
        %v1562 = vcombine.low %v1427, %v1429
        %v1563 = vcombine.low %v1468, %v1470
        %v1565 = vunpack.c.l.s4 1983009808
        %v1566 = vunpack.c.0.s8 %v1565
        %v1567 = vlaneseq
        %v1568 = vshrl.u32 %v1567, 7
        %v1569 = vsub.s32 %v1566, %v1568
        %v1570 = vrot.slane %v1562, %v1569
        %v1572 = vunpack.c.l.s4 1983009808
        %v1573 = vunpack.c.0.s8 %v1572
        %v1574 = vlaneseq
        %v1575 = vshrl.u32 %v1574, 7
        %v1576 = vsub.s32 %v1573, %v1575
        %v1577 = vrot.slane %v1563, %v1576
        %v1578 = vcombine.low %v1570, %v1577
        %1584 = vst [vmem:[%s240] sm:$0xff] %v1510
        %1585 = vst [vmem:[%s240 + $0x8] sm:$0xff] %v1527
        %1586 = vst [vmem:[%s240 + $0x10] sm:$0xff] %v1544
        %1587 = vst [vmem:[%s240 + $0x18] sm:$0xff] %v1561
        %1588 = vst [vmem:[%s240 + $0x20] sm:$0xff] %v1578
        %s1589 = sand.u32 %s140, 1
        %s1590 = scalar_lea.sflag [#allocation4], %s1589
        %s1591 = sand.u32 %s140, 1
        %s1592 = smul.addr %s1591, 40
        %s1593 = scalar_lea.vmem [#allocation5], %s1592
        // Predicated region
        $region45: #{mlp_edge_encoder_pallas_t.1} parent=39 // pred_check
          %p1594 = pneg %p150
        $region46: #{mlp_edge_encoder_pallas_t.1} parent=39 // pred_check_branch
          %1596 = sbr.rel (%p1594) target = $region48
        $region47: #{mlp_edge_encoder_pallas_t.1} parent=39 // pred_region
          %s1597 = smul.u32 20, %s22
          %s1599 = ssub.s32 640, 640
          %1600 = vsyncadd %s1590, %s1599
          %s1601 = smul.addr %s1597, 32
          %s1602 = scalar_lea.hbm %s5, %s1601
          %s1604 = sshll.u32 %s1593, 4
          %s1605 = int_to_ptr.vmem [resolvable:$true] %s1604
          %1607 = dma.vmem_to_hbm [thread:$0]  %s1605, 640, %s1602, %s1590
        $region48: #{mlp_edge_encoder_pallas_t.1} parent=39 // pred_fallthru
          _
      $region40: #{mlp_edge_encoder_pallas_t.1} parent=5 // pred_fallthru
        _
      %p1608 = scmp.le.s32.totalorder 2, %s17
      // Predicated region
      $region49: #{mlp_edge_encoder_pallas_t.1} parent=5 // pred_check
        %p1609 = pneg %p1608
      $region50: #{mlp_edge_encoder_pallas_t.1} parent=5 // pred_check_branch
        %1611 = sbr.rel (%p1609) target = $region52
      $region51: #{mlp_edge_encoder_pallas_t.1} parent=5 // pred_region
        %s1612 = ssub.s32 %s17, 2
        // Predicated region
        $region53: #{mlp_edge_encoder_pallas_t.1} parent=51 // pred_check
          %p1613 = pneg %p156
        $region54: #{mlp_edge_encoder_pallas_t.1} parent=51 // pred_check_branch
          %1615 = sbr.rel (%p1613) target = $region56
        $region55: #{mlp_edge_encoder_pallas_t.1} parent=51 // pred_region
          %s1616 = sand.u32 %s141, 1
          %s1617 = scalar_lea.sflag [#allocation4], %s1616
          %s1618 = sand.u32 %s141, 1
          %s1619 = smul.addr %s1618, 40
          %s1620 = scalar_lea.vmem [#allocation5], %s1619
          %1621 = dma.done %s1617, 640
        $region56: #{mlp_edge_encoder_pallas_t.1} parent=51 // pred_fallthru
          _
      $region52: #{mlp_edge_encoder_pallas_t.1} parent=5 // pred_fallthru
        _
    $region6: #{mlp_edge_encoder_pallas_t.1} parent=1 // loop_footer
      %s21 = sadd.s32 1, %s17
    $region7: #{mlp_edge_encoder_pallas_t.1} parent=1 // loop_footer_branch
      %16 = sbr.rel target = $region3
    $region8: #{mlp_edge_encoder_pallas_t.1} parent=1 // loop_exit
      _
    %1622 = vsyncpa [#allocation3], 1
    %s1623 = scalar_lea.sflag [#allocation3], 1
    %1624 = vsyncpa %s1623, 1
    %1625 = vsyncpa [#allocation4], 1
    %s1626 = scalar_lea.sflag [#allocation4], 1
    %1627 = vsyncpa %s1626, 1

</llo_original>
